<compile_context>
chip_gen: v7x
topology: tpu7x:2x2x1
jax: 0.10.0
libtpu: 0.0.40
codegen_flags: <defaults>
</compile_context>

<pallas_src>
import functools
import numpy as np
import jax
import jax.numpy as jnp
from jax import lax
from jax.experimental import pallas as pl
from jax.experimental.pallas import tpu as pltpu

F32 = jnp.float32
BF16 = jnp.bfloat16
HEADS, DIM_HEAD = 8, 32
CHANNELS = [64, 96, 192, 384, 768]
NUM_BLOCKS = [2, 2, 3, 5, 2]
VMEM_LIMIT = 48 * 1024 * 1024          # explicit scoped-VMEM budget (safe on v5e/v6e/v7x)


def _ceil_to(x, m):
    return ((x + m - 1) // m) * m


def _pick_tile(dim, align, cap):
    """(tile, padded_dim): full extent when it fits the cap (no pad, 'full dim' rule),
    else a cap-bounded multiple of `align` dividing the padded extent."""
    if dim <= cap:
        return dim, dim
    p = _ceil_to(dim, align)
    for t in range(cap, align - 1, -align):
        if p % t == 0:
            return t, p
    return cap, _ceil_to(p, cap)


def _gelu_tanh(x):
    # TODO(synk): tanh-approx GELU inside kernels (EUP tanh); PyTorch nn.GELU uses erf.
    c = 0.7978845608028654  # sqrt(2/pi)
    return 0.5 * x * (1.0 + jnp.tanh(c * (x + 0.044715 * x * x * x)))


# ---------------------------------------------------------------------------
# Pallas kernels
# ---------------------------------------------------------------------------

def _matmul_epilogue_kernel(a_ref, b_ref, s_ref, c_ref, o_ref, acc_ref, *, act):
    @pl.when(pl.program_id(2) == 0)
    def _():
        acc_ref[...] = jnp.zeros_like(acc_ref)

    acc_ref[...] += jnp.dot(a_ref[...], b_ref[...], preferred_element_type=jnp.float32)

    @pl.when(pl.program_id(2) == pl.num_programs(2) - 1)
    def _():
        y = acc_ref[...] * s_ref[...] + c_ref[...]
        if act == "relu":
            y = jnp.maximum(y, 0.0)
        elif act == "gelu":
            y = _gelu_tanh(y)
        o_ref[...] = y.astype(o_ref.dtype)


def matmul_affine(a, b, scale=None, shift=None, act="none", out_dtype=BF16):
    """(M, K) @ (K, N): bf16 MXU feeds, f32 accumulation, fused per-column affine
    (BatchNorm-eval / bias) + activation epilogue; output dtype selectable (bf16 default)."""
    M, K = a.shape
    _, N = b.shape
    scale = jnp.ones((N,), F32) if scale is None else scale.astype(F32)
    shift = jnp.zeros((N,), F32) if shift is None else shift.astype(F32)

    tm, Mp = _pick_tile(M, 16, 512)     # 16: bf16 sublane packing
    tn, Np = _pick_tile(N, 128, 512)
    tk, Kp = _pick_tile(K, 128, 512)

    a_p = a.astype(BF16)
    b_p = b.astype(BF16)
    if (Mp, Kp) != (M, K):
        a_p = jnp.pad(a_p, ((0, Mp - M), (0, Kp - K)))
    if (Kp, Np) != (K, N):
        b_p = jnp.pad(b_p, ((0, Kp - K), (0, Np - N)))
    s_p = scale.reshape(1, N)
    c_p = shift.reshape(1, N)
    if Np != N:
        s_p = jnp.pad(s_p, ((0, 0), (0, Np - N)))
        c_p = jnp.pad(c_p, ((0, 0), (0, Np - N)))

    out = pl.pallas_call(
        functools.partial(_matmul_epilogue_kernel, act=act),
        out_shape=jax.ShapeDtypeStruct((Mp, Np), out_dtype),
        grid=(Mp // tm, Np // tn, Kp // tk),
        in_specs=[pl.BlockSpec((tm, tk), lambda i, j, k: (i, k)),
                  pl.BlockSpec((tk, tn), lambda i, j, k: (k, j)),
                  pl.BlockSpec((1, tn), lambda i, j, k: (0, j)),
                  pl.BlockSpec((1, tn), lambda i, j, k: (0, j))],
        out_specs=pl.BlockSpec((tm, tn), lambda i, j, k: (i, j)),
        scratch_shapes=[pltpu.VMEM((tm, tn), F32)],
        compiler_params=pltpu.CompilerParams(
            dimension_semantics=("parallel", "parallel", "arbitrary"),
            vmem_limit_bytes=VMEM_LIMIT),
    )(a_p, b_p, s_p, c_p)
    if (Mp, Np) != (M, N):
        out = out[:M, :N]
    return out


def _layernorm_kernel(x_ref, w_ref, b_ref, o_ref, *, eps):
    x = x_ref[...].astype(jnp.float32)
    mu = jnp.mean(x, axis=-1, keepdims=True)
    xc = x - mu
    var = jnp.mean(xc * xc, axis=-1, keepdims=True)
    y = xc * lax.rsqrt(var + eps) * w_ref[...] + b_ref[...]
    o_ref[...] = y.astype(o_ref.dtype)


def pallas_layernorm(x2d, w, b, eps=1e-5):
    M, C = x2d.shape
    tm, Mp = _pick_tile(M, 16, 512)
    x_p = x2d
    if Mp != M:
        x_p = jnp.pad(x_p, ((0, Mp - M), (0, 0)))
    out = pl.pallas_call(
        functools.partial(_layernorm_kernel, eps=eps),
        out_shape=jax.ShapeDtypeStruct((Mp, C), BF16),
        grid=(Mp // tm,),
        in_specs=[pl.BlockSpec((tm, C), lambda i: (i, 0)),
                  pl.BlockSpec((1, C), lambda i: (0, 0)),
                  pl.BlockSpec((1, C), lambda i: (0, 0))],
        out_specs=pl.BlockSpec((tm, C), lambda i: (i, 0)),
        compiler_params=pltpu.CompilerParams(dimension_semantics=("parallel",),
                                             vmem_limit_bytes=VMEM_LIMIT),
    )(x_p, w.reshape(1, C).astype(F32), b.reshape(1, C).astype(F32))
    return out[:M] if Mp != M else out


def _conv3x3_kernel(x_ref, w_ref, s_ref, c_ref, o_ref, *, H, W, act):
    """3x3 stride-1 conv on a halo'd (H+2, W+2, Cin) block: 9 tap GEMMs accumulated in
    f32, fused BN/bias + activation epilogue, bf16 store."""
    cin = x_ref.shape[-1]
    cout = o_ref.shape[-1]
    acc = jnp.zeros((H * W, cout), jnp.float32)
    for dy in range(3):
        for dx in range(3):
            a = x_ref[dy:dy + H, dx:dx + W, :].reshape(H * W, cin)
            acc = acc + jnp.dot(a, w_ref[dy * 3 + dx],
                                preferred_element_type=jnp.float32)
    y = acc * s_ref[...] + c_ref[...]
    if act == "relu":
        y = jnp.maximum(y, 0.0)
    elif act == "gelu":
        y = _gelu_tanh(y)
    o_ref[...] = y.reshape(H, W, cout).astype(o_ref.dtype)


def pallas_conv3x3(x, w, scale=None, shift=None, act="none", out_dtype=BF16):
    """Conv2d(k=3, s=1, p=1) without any HBM im2col: halo-tiled per batch image."""
    B, H, W, C = x.shape
    cout = w.shape[-1]
    W16 = _ceil_to(W, 16)                       # keep in-kernel flattens layout-preserving
    xp = jnp.pad(x.astype(BF16), ((0, 0), (1, 1), (1, W16 - W + 1), (0, 0)))
    wk = w.reshape(9, C, cout).astype(BF16)
    s = (jnp.ones((cout,), F32) if scale is None else scale.astype(F32)).reshape(1, cout)
    c = (jnp.zeros((cout,), F32) if shift is None else shift.astype(F32)).reshape(1, cout)
    out = pl.pallas_call(
        functools.partial(_conv3x3_kernel, H=H, W=W16, act=act),
        out_shape=jax.ShapeDtypeStruct((B, H, W16, cout), out_dtype),
        grid=(B,),
        in_specs=[pl.BlockSpec((None, H + 2, W16 + 2, C), lambda b: (b, 0, 0, 0)),
                  pl.BlockSpec((9, C, cout), lambda b: (0, 0, 0)),
                  pl.BlockSpec((1, cout), lambda b: (0, 0)),
                  pl.BlockSpec((1, cout), lambda b: (0, 0))],
        out_specs=pl.BlockSpec((None, H, W16, cout), lambda b: (b, 0, 0, 0)),
        compiler_params=pltpu.CompilerParams(dimension_semantics=("parallel",),
                                             vmem_limit_bytes=VMEM_LIMIT),
    )(xp, wk, s, c)
    return out[:, :, :W, :] if W16 != W else out


def _dwconv3x3_kernel(x_ref, w_ref, s_ref, c_ref, o_ref, *, H, W, act):
    """Depthwise 3x3 on a halo'd block, fused BN + activation, bf16 store."""
    w = w_ref[...]                                          # (9, C) f32
    acc = None
    for dy in range(3):
        for dx in range(3):
            k = dy * 3 + dx
            t = x_ref[dy:dy + H, dx:dx + W, :].astype(jnp.float32) * w[k:k + 1, :]
            acc = t if acc is None else acc + t
    y = acc * s_ref[...] + c_ref[...]
    if act == "gelu":
        y = _gelu_tanh(y)
    elif act == "relu":
        y = jnp.maximum(y, 0.0)
    o_ref[...] = y.astype(o_ref.dtype)


def pallas_dwconv3x3(x, w9c, scale, shift, act="gelu"):
    """Depthwise 3x3 (s=1, p=1, groups=C) with fused BN + activation, halo-tiled.
    TODO(synk): add row-band tiling for very large spatial extents (whole image per step)."""
    B, H, W, C = x.shape
    xp = jnp.pad(x.astype(BF16), ((0, 0), (1, 1), (1, 1), (0, 0)))
    return pl.pallas_call(
        functools.partial(_dwconv3x3_kernel, H=H, W=W, act=act),
        out_shape=jax.ShapeDtypeStruct((B, H, W, C), BF16),
        grid=(B,),
        in_specs=[pl.BlockSpec((None, H + 2, W + 2, C), lambda b: (b, 0, 0, 0)),
                  pl.BlockSpec((9, C), lambda b: (0, 0)),
                  pl.BlockSpec((1, C), lambda b: (0, 0)),
                  pl.BlockSpec((1, C), lambda b: (0, 0))],
        out_specs=pl.BlockSpec((None, H, W, C), lambda b: (b, 0, 0, 0)),
        compiler_params=pltpu.CompilerParams(dimension_semantics=("parallel",),
                                             vmem_limit_bytes=VMEM_LIMIT),
    )(xp, w9c.astype(F32), scale.reshape(1, C).astype(F32), shift.reshape(1, C).astype(F32))


def _deconv_kernel(x_ref, w_ref, b_ref, o00_ref, o01_ref, o10_ref, o11_ref, *, H, W):
    """ConvTranspose2d(k3, s2, p1, op1) via sub-pixel decomposition: the 4 phases are
    computed from a single halo'd read of x (9 taps total, bias fused)."""
    cin = x_ref.shape[-1]
    cout = o00_ref.shape[-1]
    x00 = x_ref[0:H, 0:W, :].reshape(H * W, cin)
    x01 = x_ref[0:H, 1:W + 1, :].reshape(H * W, cin)
    x10 = x_ref[1:H + 1, 0:W, :].reshape(H * W, cin)
    x11 = x_ref[1:H + 1, 1:W + 1, :].reshape(H * W, cin)
    b = b_ref[...]                                          # (1, cout) f32

    def mm(a, k):                                           # w index k = ky*3 + kx
        return jnp.dot(a, w_ref[k], preferred_element_type=jnp.float32)

    y00 = mm(x00, 4) + b
    y01 = mm(x00, 5) + mm(x01, 3) + b
    y10 = mm(x00, 7) + mm(x10, 1) + b
    y11 = mm(x00, 8) + mm(x01, 6) + mm(x10, 2) + mm(x11, 0) + b
    o00_ref[...] = y00.reshape(H, W, cout).astype(o00_ref.dtype)
    o01_ref[...] = y01.reshape(H, W, cout).astype(o01_ref.dtype)
    o10_ref[...] = y10.reshape(H, W, cout).astype(o10_ref.dtype)
    o11_ref[...] = y11.reshape(H, W, cout).astype(o11_ref.dtype)


def conv_transpose3x3_s2(x, w, bias):
    """ConvTranspose2d(k=3, s=2, p=1, output_padding=1), weights [ky, kx, cin, cout]
    (PyTorch semantics oy = 2*iy + ky - 1).  One fused Pallas kernel -> 4 bf16 phases;
    the 2x2 sub-pixel interleave stays as a single cheap bf16 reshuffle in JAX.
    TODO(synk): fold the interleave into the following 3x3 conv's tap indexing."""
    B, H, W, C = x.shape
    cout = w.shape[-1]
    W16 = _ceil_to(W, 16)
    xp = jnp.pad(x.astype(BF16), ((0, 0), (0, 1), (0, W16 - W + 1), (0, 0)))
    wk = w.reshape(9, C, cout).astype(BF16)
    phase = jax.ShapeDtypeStruct((B, H, W16, cout), BF16)
    y00, y01, y10, y11 = pl.pallas_call(
        functools.partial(_deconv_kernel, H=H, W=W16),
        out_shape=(phase, phase, phase, phase),
        grid=(B,),
        in_specs=[pl.BlockSpec((None, H + 1, W16 + 1, C), lambda b: (b, 0, 0, 0)),
                  pl.BlockSpec((9, C, cout), lambda b: (0, 0, 0)),
                  pl.BlockSpec((1, cout), lambda b: (0, 0))],
        out_specs=tuple(pl.BlockSpec((None, H, W16, cout), lambda b: (b, 0, 0, 0))
                        for _ in range(4)),
        compiler_params=pltpu.CompilerParams(dimension_semantics=("parallel",),
                                             vmem_limit_bytes=VMEM_LIMIT),
    )(xp, wk, bias.reshape(1, cout).astype(F32))
    if W16 != W:
        y00, y01, y10, y11 = [t[:, :, :W, :] for t in (y00, y01, y10, y11)]
    t = jnp.stack([jnp.stack([y00, y01], axis=0), jnp.stack([y10, y11], axis=0)], axis=0)
    t = t.transpose(2, 3, 0, 4, 1, 5)                       # (B, H, r, W, s, C)
    return t.reshape(B, 2 * H, 2 * W, cout)


def _attention_kernel(q_ref, k_ref, v_ref, bias_ref, o_ref, *, scale, heads, dim_head):
    """All heads of one batch element.  q/k/v refs stay in (n, heads*dim) GEMM layout;
    per-head lane slices feed the MXU; output written lane-dense as (n, heads*dim).
    TODO(synk): flash-style KV tiling (online softmax) for large n."""
    for h in range(heads):
        sl = slice(h * dim_head, (h + 1) * dim_head)
        qh = q_ref[:, sl]
        kh = k_ref[:, sl]
        vh = v_ref[:, sl]
        s = lax.dot_general(qh, kh, (((1,), (1,)), ((), ())),
                            preferred_element_type=jnp.float32)        # (n, n)
        s = s * scale + bias_ref[h]
        m = jnp.max(s, axis=-1, keepdims=True)
        e = jnp.exp(s - m)
        inv = pl.reciprocal(jnp.sum(e, axis=-1, keepdims=True), approx=True)
        p = (e * inv).astype(BF16)
        o = jnp.dot(p, vh, preferred_element_type=jnp.float32)         # (n, d)
        o_ref[:, sl] = o.astype(o_ref.dtype)


def pallas_attention(q, k, v, bias, scale):
    """q/k/v: (B, n, heads*dim) in the natural qkv-GEMM layout (no HBM transposes);
    bias: (heads, n, n), fetched once per grid step (constant block index)."""
    B, n, inner = q.shape
    H = bias.shape[0]
    d = inner // H
    return pl.pallas_call(
        functools.partial(_attention_kernel, scale=scale, heads=H, dim_head=d),
        out_shape=jax.ShapeDtypeStruct((B, n, inner), BF16),
        grid=(B,),
        in_specs=[pl.BlockSpec((None, n, inner), lambda b: (b, 0, 0)),
                  pl.BlockSpec((None, n, inner), lambda b: (b, 0, 0)),
                  pl.BlockSpec((None, n, inner), lambda b: (b, 0, 0)),
                  pl.BlockSpec((H, n, n), lambda b: (0, 0, 0))],
        out_specs=pl.BlockSpec((None, n, inner), lambda b: (b, 0, 0)),
        compiler_params=pltpu.CompilerParams(dimension_semantics=("arbitrary",),
                                             vmem_limit_bytes=VMEM_LIMIT),
    )(q.astype(BF16), k.astype(BF16), v.astype(BF16), bias.astype(F32))


def _maxpool_kernel(p_ref, o_ref):
    acc = p_ref[0]
    for k in range(1, 9):
        acc = jnp.maximum(acc, p_ref[k])
    o_ref[...] = acc


def pallas_maxpool(patches):
    """patches: (9, M, C) shifted taps -> per-position 3x3 max, (M, C)."""
    _, M, C = patches.shape
    tm, Mp = _pick_tile(M, 8, 256)
    p_p = patches
    if Mp != M:
        p_p = jnp.pad(p_p, ((0, 0), (0, Mp - M), (0, 0)))
    out = pl.pallas_call(
        _maxpool_kernel,
        out_shape=jax.ShapeDtypeStruct((Mp, C), patches.dtype),
        grid=(Mp // tm,),
        in_specs=[pl.BlockSpec((9, tm, C), lambda i: (0, i, 0))],
        out_specs=pl.BlockSpec((tm, C), lambda i: (i, 0)),
        compiler_params=pltpu.CompilerParams(dimension_semantics=("parallel",),
                                             vmem_limit_bytes=VMEM_LIMIT),
    )(p_p)
    return out[:M] if Mp != M else out


# ---------------------------------------------------------------------------
# Conv / pool helpers
# ---------------------------------------------------------------------------

def conv2d_bn_act(x, w, scale=None, shift=None, act="none", stride=1, pad=0,
                  out_dtype=BF16):
    """NHWC conv with fused BN/bias + activation.  1x1 -> GEMM; 3x3 s=1 -> halo kernel;
    3x3 s=2 (stem only, tiny Cin) -> im2col GEMM."""
    kh, kw, cin, cout = w.shape
    B, H, W, C = x.shape
    if kh == 1 and kw == 1 and pad == 0:
        xs = x[:, ::stride, ::stride, :] if stride != 1 else x
        Bo, Ho, Wo, _ = xs.shape
        y = matmul_affine(xs.reshape(-1, C), w.reshape(cin, cout), scale, shift,
                          act=act, out_dtype=out_dtype)
        return y.reshape(Bo, Ho, Wo, cout)
    if kh == 3 and kw == 3 and stride == 1 and pad == 1:
        return pallas_conv3x3(x, w, scale, shift, act=act, out_dtype=out_dtype)
    # stride-2 3x3 stem conv: Cin is tiny (3*T), im2col patches stay cheap.
    xb = x.astype(BF16)
    xp = jnp.pad(xb, ((0, 0), (pad, pad), (pad, pad), (0, 0)))
    OH = (H + 2 * pad - kh) // stride + 1
    OW = (W + 2 * pad - kw) // stride + 1
    cols = [xp[:, dy:dy + OH * stride:stride, dx:dx + OW * stride:stride, :]
            for dy in range(kh) for dx in range(kw)]
    patches = jnp.concatenate(cols, axis=-1)
    y = matmul_affine(patches.reshape(-1, kh * kw * cin),
                      w.reshape(kh * kw * cin, cout), scale, shift,
                      act=act, out_dtype=out_dtype)
    return y.reshape(B, OH, OW, cout)


def maxpool3x3_s2(x):
    """MaxPool2d(kernel=3, stride=2, padding=1).
    TODO(synk): halo-tile the stride-2 taps inside a kernel; this op only runs at the
    4 downsample boundaries so the 9-tap patch build is a small term."""
    B, H, W, C = x.shape
    OH = (H - 1) // 2 + 1
    OW = (W - 1) // 2 + 1
    xp = jnp.pad(x, ((0, 0), (1, 1), (1, 1), (0, 0)), constant_values=-jnp.inf)
    cols = [xp[:, dy:dy + OH * 2:2, dx:dx + OW * 2:2, :]
            for dy in range(3) for dx in range(3)]
    patches = jnp.stack(cols, axis=0).reshape(9, B * OH * OW, C)
    return pallas_maxpool(patches).reshape(B, OH, OW, C)


# ---------------------------------------------------------------------------
# CoAtNet blocks
# ---------------------------------------------------------------------------

def mbconv_forward(x, p):
    downsample = p["downsample"]
    shortcut = x
    inp = x.shape[-1]
    hidden = p["pw1_w"].shape[-1]
    # Fold the PreNorm BatchNorm into the expand 1x1 conv: (x*s+b)@W == x@(sW) + b@W.
    w1 = p["pw1_w"].reshape(inp, hidden)
    eff_w1 = p["pre_bn"]["scale"][:, None] * w1
    pre_shift = p["pre_bn"]["shift"] @ w1                        # (hidden,)
    s1, b1 = p["bn1"]["scale"], p["bn1"]["shift"]
    stride = 2 if downsample else 1
    y = conv2d_bn_act(x, eff_w1.reshape(1, 1, inp, hidden),
                      scale=s1, shift=s1 * pre_shift + b1, act="gelu",
                      stride=stride, pad=0)
    # depthwise 3x3 + BN + GELU, halo-tiled (no patch materialization)
    y = pallas_dwconv3x3(y, p["dw_w"], p["bn2"]["scale"], p["bn2"]["shift"], act="gelu")
    # Squeeze-Excite: tiny (B x C) work, plain JAX (exact erf GELU like nn.GELU).
    s = jnp.mean(y.astype(F32), axis=(1, 2))
    s = jax.nn.gelu(s @ p["se_fc1"], approximate=False)
    s = jax.nn.sigmoid(s @ p["se_fc2"])
    y = y * s.astype(BF16)[:, None, None, :]
    # pw-linear + BN (fused)
    y = conv2d_bn_act(y, p["pw2_w"], p["bn3"]["scale"], p["bn3"]["shift"], act="none")
    if downsample:
        sc = maxpool3x3_s2(shortcut)
        sc = conv2d_bn_act(sc, p["proj_w"])
        return sc + y
    return shortcut + y


def relative_bias(table, ih, iw):
    coords = np.stack(np.meshgrid(np.arange(ih), np.arange(iw), indexing="ij")).reshape(2, -1)
    rel = coords[:, :, None] - coords[:, None, :]
    rel[0] += ih - 1
    rel[1] += iw - 1
    rel[0] *= 2 * iw - 1
    idx = rel.transpose(1, 2, 0).sum(-1).reshape(-1)             # (n*n,)
    n = ih * iw
    bias = table[idx]                                            # gather (JAX glue)
    return bias.reshape(n, n, HEADS).transpose(2, 0, 1)          # (heads, n, n)


def attention_forward(x_seq, p, ih, iw):
    B, n, cin = x_seq.shape
    inner = HEADS * DIM_HEAD
    qkv = matmul_affine(x_seq.reshape(-1, cin), p["to_qkv"])     # (B*n, 3*inner) bf16
    q = qkv[:, :inner].reshape(B, n, inner)
    k = qkv[:, inner:2 * inner].reshape(B, n, inner)
    v = qkv[:, 2 * inner:].reshape(B, n, inner)
    bias = relative_bias(p["rel_table"], ih, iw)                 # (heads, n, n)
    o = pallas_attention(q, k, v, bias, DIM_HEAD ** -0.5)        # (B, n, inner) bf16
    o = matmul_affine(o.reshape(B * n, inner), p["to_out_w"], shift=p["to_out_b"])
    return o.reshape(B, n, p["to_out_b"].shape[0])


def transformer_forward(x, p):
    if p["downsample"]:
        pooled = maxpool3x3_s2(x)                                # pool1 == pool2 (no params)
        shortcut = conv2d_bn_act(pooled, p["proj_w"])
        attn_in = pooled
    else:
        shortcut = x
        attn_in = x
    B, H, W, C = attn_in.shape
    n = H * W
    seq = pallas_layernorm(attn_in.reshape(-1, C), p["attn_ln_w"], p["attn_ln_b"])
    y = attention_forward(seq.reshape(B, n, C), p, H, W)
    oup = y.shape[-1]
    x = shortcut + y.reshape(B, H, W, oup)
    # feed-forward (biases + GELU fused into the GEMMs)
    z = pallas_layernorm(x.reshape(-1, oup), p["ff_ln_w"], p["ff_ln_b"])
    z = matmul_affine(z, p["ff_w1"], shift=p["ff_b1"], act="gelu")
    z = matmul_affine(z, p["ff_w2"], shift=p["ff_b2"])
    return x + z.reshape(B, H, W, oup)


def upscaling_block_forward(x, p):
    y = conv_transpose3x3_s2(x, p["deconv_w"], p["deconv_b"])
    scale = p["bn"]["scale"]
    shift = p["bn"]["shift"] + scale * p["conv_b"]               # fold conv bias into BN affine
    return conv2d_bn_act(y, p["conv_w"], scale, shift, act="relu", stride=1, pad=1)


def coatnet_seg_forward(img, P):
    B, C, T, H, W = img.shape
    x = img.reshape(B, C * T, H, W).transpose(0, 2, 3, 1).astype(F32)   # NCHW -> NHWC
    for blk in P["s0"]:
        x = conv2d_bn_act(x, blk["w"], blk["bn"]["scale"], blk["bn"]["shift"],
                          act="gelu", stride=blk["stride"], pad=1)
    for blk in P["s1"]:
        x = mbconv_forward(x, blk)
    for blk in P["s2"]:
        x = mbconv_forward(x, blk)
    for blk in P["s3"]:
        x = transformer_forward(x, blk)
    for blk in P["s4"]:
        x = transformer_forward(x, blk)
    for blk in P["head"]:
        x = upscaling_block_forward(x, blk)
    x = conv2d_bn_act(x, P["final_w"], shift=P["final_b"], out_dtype=F32)
    return x.transpose(0, 3, 1, 2)                               # back to NCHW


# ---------------------------------------------------------------------------
# Deterministic parameter initialization (synthetic; no checkpoint loading)
# ---------------------------------------------------------------------------

class Init:
    def __init__(self, seed=0):
        self.key = jax.random.PRNGKey(seed)

    def n(self, *shape, std=0.05):
        self.key, k = jax.random.split(self.key)
        return (std * jax.random.normal(k, shape, F32)).astype(F32)

    def w(self, *shape):
        fan_in = int(np.prod(shape[:-1]))
        return self.n(*shape, std=float(1.0 / np.sqrt(fan_in)))

    def bn(self, c):
        # eval-mode BatchNorm folded to per-channel affine (scale, shift)
        return {"scale": (1.0 + self.n(c, std=0.05)).astype(F32),
                "shift": self.n(c, std=0.05)}


def init_model_params(seed, image_size, temporal_step, num_classes):
    init = Init(seed)

    def mbconv_params(inp, oup, downsample):
        hidden = inp * 4
        mid = int(inp * 0.25)
        p = {"downsample": downsample,
             "pre_bn": init.bn(inp),
             "pw1_w": init.w(1, 1, inp, hidden), "bn1": init.bn(hidden),
             "dw_w": init.w(9, hidden), "bn2": init.bn(hidden),
             "se_fc1": init.w(hidden, mid), "se_fc2": init.w(mid, hidden),
             "pw2_w": init.w(1, 1, hidden, oup), "bn3": init.bn(oup)}
        if downsample:
            p["proj_w"] = init.w(1, 1, inp, oup)
        return p

    def transformer_params(inp, oup, ihw, downsample):
        inner = HEADS * DIM_HEAD
        hidden = inp * 4
        th, tw = ihw
        p = {"downsample": downsample,
             "attn_ln_w": (1.0 + init.n(inp, std=0.02)).astype(F32),
             "attn_ln_b": init.n(inp, std=0.02),
             "to_qkv": init.w(inp, inner * 3),
             "to_out_w": init.w(inner, oup), "to_out_b": init.n(oup, std=0.02),
             "rel_table": init.n((2 * th - 1) * (2 * tw - 1), HEADS, std=0.02),
             "ff_ln_w": (1.0 + init.n(oup, std=0.02)).astype(F32),
             "ff_ln_b": init.n(oup, std=0.02),
             "ff_w1": init.w(oup, hidden), "ff_b1": init.n(hidden, std=0.02),
             "ff_w2": init.w(hidden, oup), "ff_b2": init.n(oup, std=0.02)}
        if downsample:
            p["proj_w"] = init.w(1, 1, inp, oup)
        return p

    P = {}
    c_in = 3 * temporal_step
    P["s0"] = []
    for i in range(NUM_BLOCKS[0]):
        inp = c_in if i == 0 else CHANNELS[0]
        P["s0"].append({"w": init.w(3, 3, inp, CHANNELS[0]),
                        "bn": init.bn(CHANNELS[0]),
                        "stride": 2 if i == 0 else 1})
    P["s1"] = [mbconv_params(CHANNELS[0], CHANNELS[1], True)] + \
              [mbconv_params(CHANNELS[1], CHANNELS[1], False) for _ in range(NUM_BLOCKS[1] - 1)]
    P["s2"] = [mbconv_params(CHANNELS[1], CHANNELS[2], True)] + \
              [mbconv_params(CHANNELS[2], CHANNELS[2], False) for _ in range(NUM_BLOCKS[2] - 1)]
    s3_hw = (image_size // 16, image_size // 16)
    s4_hw = (image_size // 32, image_size // 32)
    P["s3"] = [transformer_params(CHANNELS[2], CHANNELS[3], s3_hw, True)] + \
              [transformer_params(CHANNELS[3], CHANNELS[3], s3_hw, False) for _ in range(NUM_BLOCKS[3] - 1)]
    P["s4"] = [transformer_params(CHANNELS[3], CHANNELS[4], s4_hw, True)] + \
              [transformer_params(CHANNELS[4], CHANNELS[4], s4_hw, False) for _ in range(NUM_BLOCKS[4] - 1)]
    embed = [768 // (2 ** i) for i in range(6)]
    P["head"] = []
    for i in range(5):
        cin, cout = embed[i], embed[i + 1]
        P["head"].append({"deconv_w": init.w(3, 3, cin, cout), "deconv_b": init.n(cout, std=0.02),
                          "conv_w": init.w(3, 3, cout, cout), "conv_b": init.n(cout, std=0.02),
                          "bn": init.bn(cout)})
    P["final_w"] = init.w(1, 1, embed[5], num_classes)
    P["final_b"] = init.n(num_classes, std=0.02)
    return P


# ---------------------------------------------------------------------------

if __name__ == "__main__":
    TEMPORAL_STEP = 1
    IMAGE_SIZE = 32          # small, but divisible by 32 (5 downsampling stages)
    NUM_CLASSES = 2
    BATCH = 2

    params = init_model_params(0, IMAGE_SIZE, TEMPORAL_STEP, NUM_CLASSES)
    img = jax.random.normal(jax.random.PRNGKey(0),
                            (BATCH, 3, TEMPORAL_STEP, IMAGE_SIZE, IMAGE_SIZE), F32)

    out = coatnet_seg_forward(img, params)
    out = jax.block_until_ready(out)

    assert out.shape == (BATCH, NUM_CLASSES, IMAGE_SIZE, IMAGE_SIZE), out.shape
    assert bool(jnp.all(jnp.isfinite(out)))
    print("KERNEL_OK")
</pallas_src>

<mosaic_0001>
module attributes {stable_mosaic.version = 11 : i64} {
  func.func @_matmul_epilogue_kernel(%arg0: i32, %arg1: i32, %arg2: i32, %arg3: memref<512x27xbf16, #tpu.memory_space<vmem>>, %arg4: memref<27x64xbf16, #tpu.memory_space<vmem>>, %arg5: memref<1x64xf32, #tpu.memory_space<vmem>>, %arg6: memref<1x64xf32, #tpu.memory_space<vmem>>, %arg7: memref<512x64xbf16, #tpu.memory_space<vmem>>, %arg8: memref<512x64xf32, #tpu.memory_space<vmem>>) attributes {dimension_semantics = [#tpu.dimension_semantics<parallel>, #tpu.dimension_semantics<parallel>, #tpu.dimension_semantics<arbitrary>], iteration_bounds = array<i64: 1, 1, 1>, scalar_prefetch = 0 : i64, scratch_operands = 1 : i64, tpu.core_type = #tpu.core_type<tc>, window_params = [{transform_indices = @transform_0, window_bounds = array<i64: 512, 27>}, {transform_indices = @transform_1, window_bounds = array<i64: 27, 64>}, {transform_indices = @transform_2, window_bounds = array<i64: 1, 64>}, {transform_indices = @transform_3, window_bounds = array<i64: 1, 64>}, {transform_indices = @transform_4, window_bounds = array<i64: 512, 64>}]} {
    %c0_i32 = arith.constant 0 : i32
    %0 = arith.cmpi eq, %arg2, %c0_i32 : i32
    %1 = arith.extui %0 : i1 to i32
    %c0_i32_0 = arith.constant 0 : i32
    %2 = arith.cmpi ne, %1, %c0_i32_0 : i32
    scf.if %2 {
      %cst_10 = arith.constant 0.000000e+00 : f32
      %12 = vector.broadcast %cst_10 : f32 to vector<512x64xf32>
      %c0_11 = arith.constant 0 : index
      %c0_12 = arith.constant 0 : index
      %13 = vector.load %arg8[%c0_11, %c0_12] : memref<512x64xf32, #tpu.memory_space<vmem>>, vector<512x64xf32>
      tpu.vector_store %arg8[%c0_11, %c0_12], %12 {strides = array<i32>} : memref<512x64xf32, #tpu.memory_space<vmem>>, vector<512x64xf32>,
    } else {
    }
    %c0 = arith.constant 0 : index
    %c0_1 = arith.constant 0 : index
    %3 = vector.load %arg8[%c0, %c0_1] : memref<512x64xf32, #tpu.memory_space<vmem>>, vector<512x64xf32>
    %c0_2 = arith.constant 0 : index
    %c0_3 = arith.constant 0 : index
    %4 = vector.load %arg3[%c0_2, %c0_3] : memref<512x27xbf16, #tpu.memory_space<vmem>>, vector<512x27xbf16>
    %c0_4 = arith.constant 0 : index
    %c0_5 = arith.constant 0 : index
    %5 = vector.load %arg4[%c0_4, %c0_5] : memref<27x64xbf16, #tpu.memory_space<vmem>>, vector<27x64xbf16>
    %cst = arith.constant dense<0.000000e+00> : vector<512x64xf32>
    %6 = tpu.matmul %4, %5, %cst {dimension_numbers = #tpu.dot_dimension_numbers<[1], [0], [0], [1], [0, 0, 1, 1], [], []>} : vector<512x27xbf16>, vector<27x64xbf16>, vector<512x64xf32> -> vector<512x64xf32>
    %7 = arith.addf %3, %6 : vector<512x64xf32>
    %c0_6 = arith.constant 0 : index
    %c0_7 = arith.constant 0 : index
    %8 = vector.load %arg8[%c0_6, %c0_7] : memref<512x64xf32, #tpu.memory_space<vmem>>, vector<512x64xf32>
    tpu.vector_store %arg8[%c0_6, %c0_7], %7 {strides = array<i32>} : memref<512x64xf32, #tpu.memory_space<vmem>>, vector<512x64xf32>,
    %c0_i32_8 = arith.constant 0 : i32
    %9 = arith.cmpi eq, %arg2, %c0_i32_8 : i32
    %10 = arith.extui %9 : i1 to i32
    %c0_i32_9 = arith.constant 0 : i32
    %11 = arith.cmpi ne, %10, %c0_i32_9 : i32
    scf.if %11 {
      %c0_10 = arith.constant 0 : index
      %c0_11 = arith.constant 0 : index
      %12 = vector.load %arg8[%c0_10, %c0_11] : memref<512x64xf32, #tpu.memory_space<vmem>>, vector<512x64xf32>
      %c0_12 = arith.constant 0 : index
      %c0_13 = arith.constant 0 : index
      %13 = vector.load %arg5[%c0_12, %c0_13] : memref<1x64xf32, #tpu.memory_space<vmem>>, vector<1x64xf32>
      %14 = vector.broadcast %13 : vector<1x64xf32> to vector<512x64xf32>
      %15 = arith.mulf %12, %14 : vector<512x64xf32>
      %c0_14 = arith.constant 0 : index
      %c0_15 = arith.constant 0 : index
      %16 = vector.load %arg6[%c0_14, %c0_15] : memref<1x64xf32, #tpu.memory_space<vmem>>, vector<1x64xf32>
      %17 = vector.broadcast %16 : vector<1x64xf32> to vector<512x64xf32>
      %18 = arith.addf %15, %17 : vector<512x64xf32>
      %cst_16 = arith.constant 5.000000e-01 : f32
      %19 = vector.broadcast %cst_16 : f32 to vector<512x64xf32>
      %20 = arith.mulf %19, %18 : vector<512x64xf32>
      %cst_17 = arith.constant 4.471500e-02 : f32
      %21 = vector.broadcast %cst_17 : f32 to vector<512x64xf32>
      %22 = arith.mulf %21, %18 : vector<512x64xf32>
      %23 = arith.mulf %22, %18 : vector<512x64xf32>
      %24 = arith.mulf %23, %18 : vector<512x64xf32>
      %25 = arith.addf %18, %24 : vector<512x64xf32>
      %cst_18 = arith.constant 0.797884583 : f32
      %26 = vector.broadcast %cst_18 : f32 to vector<512x64xf32>
      %27 = arith.mulf %26, %25 : vector<512x64xf32>
      %28 = math.tanh %27 : vector<512x64xf32>
      %cst_19 = arith.constant 1.000000e+00 : f32
      %29 = vector.broadcast %cst_19 : f32 to vector<512x64xf32>
      %30 = arith.addf %29, %28 : vector<512x64xf32>
      %31 = arith.mulf %20, %30 : vector<512x64xf32>
      %32 = arith.truncf %31 : vector<512x64xf32> to vector<512x64xbf16>
      %c0_20 = arith.constant 0 : index
      %c0_21 = arith.constant 0 : index
      %33 = vector.load %arg7[%c0_20, %c0_21] : memref<512x64xbf16, #tpu.memory_space<vmem>>, vector<512x64xbf16>
      tpu.vector_store %arg7[%c0_20, %c0_21], %32 {strides = array<i32>} : memref<512x64xbf16, #tpu.memory_space<vmem>>, vector<512x64xbf16>,
    } else {
    }
    return
  }
  func.func @transform_0(%arg0: i32, %arg1: i32, %arg2: i32) -> (i32, i32) {
    %c0_i32 = arith.constant 0 : i32
    return %arg0, %arg2 : i32, i32
  }
  func.func @transform_1(%arg0: i32, %arg1: i32, %arg2: i32) -> (i32, i32) {
    %c0_i32 = arith.constant 0 : i32
    return %arg2, %arg1 : i32, i32
  }
  func.func @transform_2(%arg0: i32, %arg1: i32, %arg2: i32) -> (i32, i32) {
    %c0_i32 = arith.constant 0 : i32
    %c0_i32_0 = arith.constant 0 : i32
    return %c0_i32, %arg1 : i32, i32
  }
  func.func @transform_3(%arg0: i32, %arg1: i32, %arg2: i32) -> (i32, i32) {
    %c0_i32 = arith.constant 0 : i32
    %c0_i32_0 = arith.constant 0 : i32
    return %c0_i32, %arg1 : i32, i32
  }
  func.func @transform_4(%arg0: i32, %arg1: i32, %arg2: i32) -> (i32, i32) {
    %c0_i32 = arith.constant 0 : i32
    return %arg0, %arg1 : i32, i32
  }
}

</mosaic_0001>

<llo_original>
// kernel: tpu_custom_call.1
$region0: #{tpu_custom_call.1}
  #allocation0 [shape = 'u32[]', space=smem, size = 0x4, offset = 0x4, fixed_abs, tag = 'smem constant byte address 0x4 - core index']
  #allocation1 [shape = 'u32[144,128]{1,0:T(1,128)}', space=vmem, size = 0x12000, scoped, tag = 'internal scratch']
  #allocation2 [shape = 'f32[512,64]{1,0:T(8,128)}', space=vmem, size = 0x40000, scoped, tag = 'scratch operand']
  %s0 = inlined_call_operand.vmem [shape: bf16[512,27], index: 0, kind: input, shape index: {}]
  %s1 = inlined_call_operand.vmem [shape: bf16[27,64], index: 1, kind: input, shape index: {}]
  %s2 = inlined_call_operand.vmem [shape: f32[1,64], index: 2, kind: input, shape index: {}]
  %s3 = inlined_call_operand.vmem [shape: f32[1,64], index: 3, kind: input, shape index: {}]
  %s4 = inlined_call_operand.vmem [shape: bf16[512,64], index: 4, kind: output, shape index: {}]
  %s5 = sld [smem:[#allocation0]]
  $region34: #{tpu_custom_call.1} parent=0
    _
  %s7 = ssub.s32 1, %s5
  %s8 = scalar_select 0, %s7, %s5
  // Predicated region
  $region2: #{tpu_custom_call.1} parent=0 // pred_check
    _
  $region3: #{tpu_custom_call.1} parent=0 // pred_check_branch
    %10 = sbr.rel (0) target = $region5
  $region4: #{tpu_custom_call.1} parent=0 // pred_region
    _
  $region5: #{tpu_custom_call.1} parent=0 // pred_fallthru
    _
  // Predicated region
  $region6: #{tpu_custom_call.1} parent=0 // pred_check
    _
  $region7: #{tpu_custom_call.1} parent=0 // pred_check_branch
    %12 = sbr.rel (0) target = $region9
  $region8: #{tpu_custom_call.1} parent=0 // pred_region
    _
  $region9: #{tpu_custom_call.1} parent=0 // pred_fallthru
    _
  // Predicated region
  $region10: #{tpu_custom_call.1} parent=0 // pred_check
    _
  $region11: #{tpu_custom_call.1} parent=0 // pred_check_branch
    %14 = sbr.rel (0) target = $region13
  $region12: #{tpu_custom_call.1} parent=0 // pred_region
    _
  $region13: #{tpu_custom_call.1} parent=0 // pred_fallthru
    _
  // Predicated region
  $region14: #{tpu_custom_call.1} parent=0 // pred_check
    _
  $region15: #{tpu_custom_call.1} parent=0 // pred_check_branch
    %16 = sbr.rel (0) target = $region17
  $region16: #{tpu_custom_call.1} parent=0 // pred_region
    _
  $region17: #{tpu_custom_call.1} parent=0 // pred_fallthru
    _
  %p18 = scmp.eq.s32.totalorder 0, 0
  // Predicated region
  $region18: #{tpu_custom_call.1} parent=0 // pred_check
    %p19 = pneg %p18
  $region19: #{tpu_custom_call.1} parent=0 // pred_check_branch
    %21 = sbr.rel (%p19) target = $region21
  $region20: #{tpu_custom_call.1} parent=0 // pred_region
    %vm22 = vcmask 523264
    %23 = vst.msk [vmem:[#allocation2] sm:$0xff] %vm22, 0.0
    %24 = vst.msk [vmem:[#allocation2 + $0x8] sm:$0xff] %vm22, 0.0
    %25 = vst.msk [vmem:[#allocation2 + $0x10] sm:$0xff] %vm22, 0.0
    %26 = vst.msk [vmem:[#allocation2 + $0x18] sm:$0xff] %vm22, 0.0
    %27 = vst.msk [vmem:[#allocation2 + $0x20] sm:$0xff] %vm22, 0.0
    %28 = vst.msk [vmem:[#allocation2 + $0x28] sm:$0xff] %vm22, 0.0
    %29 = vst.msk [vmem:[#allocation2 + $0x30] sm:$0xff] %vm22, 0.0
    %30 = vst.msk [vmem:[#allocation2 + $0x38] sm:$0xff] %vm22, 0.0
    %31 = vst.msk [vmem:[#allocation2 + $0x40] sm:$0xff] %vm22, 0.0
    %32 = vst.msk [vmem:[#allocation2 + $0x48] sm:$0xff] %vm22, 0.0
    %33 = vst.msk [vmem:[#allocation2 + $0x50] sm:$0xff] %vm22, 0.0
    %34 = vst.msk [vmem:[#allocation2 + $0x58] sm:$0xff] %vm22, 0.0
    %35 = vst.msk [vmem:[#allocation2 + $0x60] sm:$0xff] %vm22, 0.0
    %36 = vst.msk [vmem:[#allocation2 + $0x68] sm:$0xff] %vm22, 0.0
    %37 = vst.msk [vmem:[#allocation2 + $0x70] sm:$0xff] %vm22, 0.0
    %38 = vst.msk [vmem:[#allocation2 + $0x78] sm:$0xff] %vm22, 0.0
    %39 = vst.msk [vmem:[#allocation2 + $0x80] sm:$0xff] %vm22, 0.0
    %40 = vst.msk [vmem:[#allocation2 + $0x88] sm:$0xff] %vm22, 0.0
    %41 = vst.msk [vmem:[#allocation2 + $0x90] sm:$0xff] %vm22, 0.0
    %42 = vst.msk [vmem:[#allocation2 + $0x98] sm:$0xff] %vm22, 0.0
    %43 = vst.msk [vmem:[#allocation2 + $0xa0] sm:$0xff] %vm22, 0.0
    %44 = vst.msk [vmem:[#allocation2 + $0xa8] sm:$0xff] %vm22, 0.0
    %45 = vst.msk [vmem:[#allocation2 + $0xb0] sm:$0xff] %vm22, 0.0
    %46 = vst.msk [vmem:[#allocation2 + $0xb8] sm:$0xff] %vm22, 0.0
    %47 = vst.msk [vmem:[#allocation2 + $0xc0] sm:$0xff] %vm22, 0.0
    %48 = vst.msk [vmem:[#allocation2 + $0xc8] sm:$0xff] %vm22, 0.0
    %49 = vst.msk [vmem:[#allocation2 + $0xd0] sm:$0xff] %vm22, 0.0
    %50 = vst.msk [vmem:[#allocation2 + $0xd8] sm:$0xff] %vm22, 0.0
    %51 = vst.msk [vmem:[#allocation2 + $0xe0] sm:$0xff] %vm22, 0.0
    %52 = vst.msk [vmem:[#allocation2 + $0xe8] sm:$0xff] %vm22, 0.0
    %53 = vst.msk [vmem:[#allocation2 + $0xf0] sm:$0xff] %vm22, 0.0
    %54 = vst.msk [vmem:[#allocation2 + $0xf8] sm:$0xff] %vm22, 0.0
    %55 = vst.msk [vmem:[#allocation2 + $0x100] sm:$0xff] %vm22, 0.0
    %56 = vst.msk [vmem:[#allocation2 + $0x108] sm:$0xff] %vm22, 0.0
    %57 = vst.msk [vmem:[#allocation2 + $0x110] sm:$0xff] %vm22, 0.0
    %58 = vst.msk [vmem:[#allocation2 + $0x118] sm:$0xff] %vm22, 0.0
    %59 = vst.msk [vmem:[#allocation2 + $0x120] sm:$0xff] %vm22, 0.0
    %60 = vst.msk [vmem:[#allocation2 + $0x128] sm:$0xff] %vm22, 0.0
    %61 = vst.msk [vmem:[#allocation2 + $0x130] sm:$0xff] %vm22, 0.0
    %62 = vst.msk [vmem:[#allocation2 + $0x138] sm:$0xff] %vm22, 0.0
    %63 = vst.msk [vmem:[#allocation2 + $0x140] sm:$0xff] %vm22, 0.0
    %64 = vst.msk [vmem:[#allocation2 + $0x148] sm:$0xff] %vm22, 0.0
    %65 = vst.msk [vmem:[#allocation2 + $0x150] sm:$0xff] %vm22, 0.0
    %66 = vst.msk [vmem:[#allocation2 + $0x158] sm:$0xff] %vm22, 0.0
    %67 = vst.msk [vmem:[#allocation2 + $0x160] sm:$0xff] %vm22, 0.0
    %68 = vst.msk [vmem:[#allocation2 + $0x168] sm:$0xff] %vm22, 0.0
    %69 = vst.msk [vmem:[#allocation2 + $0x170] sm:$0xff] %vm22, 0.0
    %70 = vst.msk [vmem:[#allocation2 + $0x178] sm:$0xff] %vm22, 0.0
    %71 = vst.msk [vmem:[#allocation2 + $0x180] sm:$0xff] %vm22, 0.0
    %72 = vst.msk [vmem:[#allocation2 + $0x188] sm:$0xff] %vm22, 0.0
    %73 = vst.msk [vmem:[#allocation2 + $0x190] sm:$0xff] %vm22, 0.0
    %74 = vst.msk [vmem:[#allocation2 + $0x198] sm:$0xff] %vm22, 0.0
    %75 = vst.msk [vmem:[#allocation2 + $0x1a0] sm:$0xff] %vm22, 0.0
    %76 = vst.msk [vmem:[#allocation2 + $0x1a8] sm:$0xff] %vm22, 0.0
    %77 = vst.msk [vmem:[#allocation2 + $0x1b0] sm:$0xff] %vm22, 0.0
    %78 = vst.msk [vmem:[#allocation2 + $0x1b8] sm:$0xff] %vm22, 0.0
    %79 = vst.msk [vmem:[#allocation2 + $0x1c0] sm:$0xff] %vm22, 0.0
    %80 = vst.msk [vmem:[#allocation2 + $0x1c8] sm:$0xff] %vm22, 0.0
    %81 = vst.msk [vmem:[#allocation2 + $0x1d0] sm:$0xff] %vm22, 0.0
    %82 = vst.msk [vmem:[#allocation2 + $0x1d8] sm:$0xff] %vm22, 0.0
    %83 = vst.msk [vmem:[#allocation2 + $0x1e0] sm:$0xff] %vm22, 0.0
    %84 = vst.msk [vmem:[#allocation2 + $0x1e8] sm:$0xff] %vm22, 0.0
    %85 = vst.msk [vmem:[#allocation2 + $0x1f0] sm:$0xff] %vm22, 0.0
    %86 = vst.msk [vmem:[#allocation2 + $0x1f8] sm:$0xff] %vm22, 0.0
  $region21: #{tpu_custom_call.1} parent=0 // pred_fallthru
    _
  %v87 = vld [vmem:[#allocation2] sm:$0xff]
  %v88 = vld [vmem:[#allocation2 + $0x8] sm:$0xff]
  %v89 = vld [vmem:[#allocation2 + $0x10] sm:$0xff]
  %v90 = vld [vmem:[#allocation2 + $0x18] sm:$0xff]
  %v91 = vld [vmem:[#allocation2 + $0x20] sm:$0xff]
  %v92 = vld [vmem:[#allocation2 + $0x28] sm:$0xff]
  %v93 = vld [vmem:[#allocation2 + $0x30] sm:$0xff]
  %v94 = vld [vmem:[#allocation2 + $0x38] sm:$0xff]
  %v95 = vld [vmem:[#allocation2 + $0x40] sm:$0xff]
  %v96 = vld [vmem:[#allocation2 + $0x48] sm:$0xff]
  %v97 = vld [vmem:[#allocation2 + $0x50] sm:$0xff]
  %v98 = vld [vmem:[#allocation2 + $0x58] sm:$0xff]
  %v99 = vld [vmem:[#allocation2 + $0x60] sm:$0xff]
  %v100 = vld [vmem:[#allocation2 + $0x68] sm:$0xff]
  %v101 = vld [vmem:[#allocation2 + $0x70] sm:$0xff]
  %v102 = vld [vmem:[#allocation2 + $0x78] sm:$0xff]
  %v103 = vld [vmem:[#allocation2 + $0x80] sm:$0xff]
  %v104 = vld [vmem:[#allocation2 + $0x88] sm:$0xff]
  %v105 = vld [vmem:[#allocation2 + $0x90] sm:$0xff]
  %v106 = vld [vmem:[#allocation2 + $0x98] sm:$0xff]
  %v107 = vld [vmem:[#allocation2 + $0xa0] sm:$0xff]
  %v108 = vld [vmem:[#allocation2 + $0xa8] sm:$0xff]
  %v109 = vld [vmem:[#allocation2 + $0xb0] sm:$0xff]
  %v110 = vld [vmem:[#allocation2 + $0xb8] sm:$0xff]
  %v111 = vld [vmem:[#allocation2 + $0xc0] sm:$0xff]
  %v112 = vld [vmem:[#allocation2 + $0xc8] sm:$0xff]
  %v113 = vld [vmem:[#allocation2 + $0xd0] sm:$0xff]
  %v114 = vld [vmem:[#allocation2 + $0xd8] sm:$0xff]
  %v115 = vld [vmem:[#allocation2 + $0xe0] sm:$0xff]
  %v116 = vld [vmem:[#allocation2 + $0xe8] sm:$0xff]
  %v117 = vld [vmem:[#allocation2 + $0xf0] sm:$0xff]
  %v118 = vld [vmem:[#allocation2 + $0xf8] sm:$0xff]
  %v119 = vld [vmem:[#allocation2 + $0x100] sm:$0xff]
  %v120 = vld [vmem:[#allocation2 + $0x108] sm:$0xff]
  %v121 = vld [vmem:[#allocation2 + $0x110] sm:$0xff]
  %v122 = vld [vmem:[#allocation2 + $0x118] sm:$0xff]
  %v123 = vld [vmem:[#allocation2 + $0x120] sm:$0xff]
  %v124 = vld [vmem:[#allocation2 + $0x128] sm:$0xff]
  %v125 = vld [vmem:[#allocation2 + $0x130] sm:$0xff]
  %v126 = vld [vmem:[#allocation2 + $0x138] sm:$0xff]
  %v127 = vld [vmem:[#allocation2 + $0x140] sm:$0xff]
  %v128 = vld [vmem:[#allocation2 + $0x148] sm:$0xff]
  %v129 = vld [vmem:[#allocation2 + $0x150] sm:$0xff]
  %v130 = vld [vmem:[#allocation2 + $0x158] sm:$0xff]
  %v131 = vld [vmem:[#allocation2 + $0x160] sm:$0xff]
  %v132 = vld [vmem:[#allocation2 + $0x168] sm:$0xff]
  %v133 = vld [vmem:[#allocation2 + $0x170] sm:$0xff]
  %v134 = vld [vmem:[#allocation2 + $0x178] sm:$0xff]
  %v135 = vld [vmem:[#allocation2 + $0x180] sm:$0xff]
  %v136 = vld [vmem:[#allocation2 + $0x188] sm:$0xff]
  %v137 = vld [vmem:[#allocation2 + $0x190] sm:$0xff]
  %v138 = vld [vmem:[#allocation2 + $0x198] sm:$0xff]
  %v139 = vld [vmem:[#allocation2 + $0x1a0] sm:$0xff]
  %v140 = vld [vmem:[#allocation2 + $0x1a8] sm:$0xff]
  %v141 = vld [vmem:[#allocation2 + $0x1b0] sm:$0xff]
  %v142 = vld [vmem:[#allocation2 + $0x1b8] sm:$0xff]
  %v143 = vld [vmem:[#allocation2 + $0x1c0] sm:$0xff]
  %v144 = vld [vmem:[#allocation2 + $0x1c8] sm:$0xff]
  %v145 = vld [vmem:[#allocation2 + $0x1d0] sm:$0xff]
  %v146 = vld [vmem:[#allocation2 + $0x1d8] sm:$0xff]
  %v147 = vld [vmem:[#allocation2 + $0x1e0] sm:$0xff]
  %v148 = vld [vmem:[#allocation2 + $0x1e8] sm:$0xff]
  %v149 = vld [vmem:[#allocation2 + $0x1f0] sm:$0xff]
  %v150 = vld [vmem:[#allocation2 + $0x1f8] sm:$0xff]
  %v151 = vld [vmem:[%s0] sm:$0xf]
  %v152 = vld [vmem:[%s0 + $0x4] sm:$0xf]
  %v153 = vld [vmem:[%s0 + $0x8] sm:$0xf]
  %v154 = vld [vmem:[%s0 + $0xc] sm:$0xf]
  %v155 = vld [vmem:[%s0 + $0x10] sm:$0xf]
  %v156 = vld [vmem:[%s0 + $0x14] sm:$0xf]
  %v157 = vld [vmem:[%s0 + $0x18] sm:$0xf]
  %v158 = vld [vmem:[%s0 + $0x1c] sm:$0xf]
  %v159 = vld [vmem:[%s0 + $0x20] sm:$0xf]
  %v160 = vld [vmem:[%s0 + $0x24] sm:$0xf]
  %v161 = vld [vmem:[%s0 + $0x28] sm:$0xf]
  %v162 = vld [vmem:[%s0 + $0x2c] sm:$0xf]
  %v163 = vld [vmem:[%s0 + $0x30] sm:$0xf]
  %v164 = vld [vmem:[%s0 + $0x34] sm:$0xf]
  %v165 = vld [vmem:[%s0 + $0x38] sm:$0xf]
  %v166 = vld [vmem:[%s0 + $0x3c] sm:$0xf]
  %v167 = vld [vmem:[%s0 + $0x40] sm:$0xf]
  %v168 = vld [vmem:[%s0 + $0x44] sm:$0xf]
  %v169 = vld [vmem:[%s0 + $0x48] sm:$0xf]
  %v170 = vld [vmem:[%s0 + $0x4c] sm:$0xf]
  %v171 = vld [vmem:[%s0 + $0x50] sm:$0xf]
  %v172 = vld [vmem:[%s0 + $0x54] sm:$0xf]
  %v173 = vld [vmem:[%s0 + $0x58] sm:$0xf]
  %v174 = vld [vmem:[%s0 + $0x5c] sm:$0xf]
  %v175 = vld [vmem:[%s0 + $0x60] sm:$0xf]
  %v176 = vld [vmem:[%s0 + $0x64] sm:$0xf]
  %v177 = vld [vmem:[%s0 + $0x68] sm:$0xf]
  %v178 = vld [vmem:[%s0 + $0x6c] sm:$0xf]
  %v179 = vld [vmem:[%s0 + $0x70] sm:$0xf]
  %v180 = vld [vmem:[%s0 + $0x74] sm:$0xf]
  %v181 = vld [vmem:[%s0 + $0x78] sm:$0xf]
  %v182 = vld [vmem:[%s0 + $0x7c] sm:$0xf]
  %v183 = vld [vmem:[%s0 + $0x80] sm:$0xf]
  %v184 = vld [vmem:[%s0 + $0x84] sm:$0xf]
  %v185 = vld [vmem:[%s0 + $0x88] sm:$0xf]
  %v186 = vld [vmem:[%s0 + $0x8c] sm:$0xf]
  %v187 = vld [vmem:[%s0 + $0x90] sm:$0xf]
  %v188 = vld [vmem:[%s0 + $0x94] sm:$0xf]
  %v189 = vld [vmem:[%s0 + $0x98] sm:$0xf]
  %v190 = vld [vmem:[%s0 + $0x9c] sm:$0xf]
  %v191 = vld [vmem:[%s0 + $0xa0] sm:$0xf]
  %v192 = vld [vmem:[%s0 + $0xa4] sm:$0xf]
  %v193 = vld [vmem:[%s0 + $0xa8] sm:$0xf]
  %v194 = vld [vmem:[%s0 + $0xac] sm:$0xf]
  %v195 = vld [vmem:[%s0 + $0xb0] sm:$0xf]
  %v196 = vld [vmem:[%s0 + $0xb4] sm:$0xf]
  %v197 = vld [vmem:[%s0 + $0xb8] sm:$0xf]
  %v198 = vld [vmem:[%s0 + $0xbc] sm:$0xf]
  %v199 = vld [vmem:[%s0 + $0xc0] sm:$0xf]
  %v200 = vld [vmem:[%s0 + $0xc4] sm:$0xf]
  %v201 = vld [vmem:[%s0 + $0xc8] sm:$0xf]
  %v202 = vld [vmem:[%s0 + $0xcc] sm:$0xf]
  %v203 = vld [vmem:[%s0 + $0xd0] sm:$0xf]
  %v204 = vld [vmem:[%s0 + $0xd4] sm:$0xf]
  %v205 = vld [vmem:[%s0 + $0xd8] sm:$0xf]
  %v206 = vld [vmem:[%s0 + $0xdc] sm:$0xf]
  %v207 = vld [vmem:[%s0 + $0xe0] sm:$0xf]
  %v208 = vld [vmem:[%s0 + $0xe4] sm:$0xf]
  %v209 = vld [vmem:[%s0 + $0xe8] sm:$0xf]
  %v210 = vld [vmem:[%s0 + $0xec] sm:$0xf]
  %v211 = vld [vmem:[%s0 + $0xf0] sm:$0xf]
  %v212 = vld [vmem:[%s0 + $0xf4] sm:$0xf]
  %v213 = vld [vmem:[%s0 + $0xf8] sm:$0xf]
  %v214 = vld [vmem:[%s0 + $0xfc] sm:$0xf]
  %v215 = vld [vmem:[%s1] sm:$0xf]
  %v216 = vld [vmem:[%s1 + $0x4] sm:$0xf]
  %v217 = vld [vmem:[%s1 + $0x8] sm:$0xf]
  %v218 = vld [vmem:[%s1 + $0xc] sm:$0x3]
  %v283 = vunpack.c.l.b16 %v151
  %v284 = vunpack.c.l.b16 %v152
  %v285 = vunpack.c.l.b16 %v153
  %v286 = vunpack.c.l.b16 %v154
  %v287 = vunpack.c.l.b16 %v155
  %v288 = vunpack.c.l.b16 %v156
  %v289 = vunpack.c.l.b16 %v157
  %v290 = vunpack.c.l.b16 %v158
  %v291 = vunpack.c.l.b16 %v159
  %v292 = vunpack.c.l.b16 %v160
  %v293 = vunpack.c.l.b16 %v161
  %v294 = vunpack.c.l.b16 %v162
  %v295 = vunpack.c.l.b16 %v163
  %v296 = vunpack.c.l.b16 %v164
  %v297 = vunpack.c.l.b16 %v165
  %v298 = vunpack.c.l.b16 %v166
  %v299 = vunpack.c.l.b16 %v167
  %v300 = vunpack.c.l.b16 %v168
  %v301 = vunpack.c.l.b16 %v169
  %v302 = vunpack.c.l.b16 %v170
  %v303 = vunpack.c.l.b16 %v171
  %v304 = vunpack.c.l.b16 %v172
  %v305 = vunpack.c.l.b16 %v173
  %v306 = vunpack.c.l.b16 %v174
  %v307 = vunpack.c.l.b16 %v175
  %v308 = vunpack.c.l.b16 %v176
  %v309 = vunpack.c.l.b16 %v177
  %v310 = vunpack.c.l.b16 %v178
  %v311 = vunpack.c.l.b16 %v179
  %v312 = vunpack.c.l.b16 %v180
  %v313 = vunpack.c.l.b16 %v181
  %v314 = vunpack.c.l.b16 %v182
  %v315 = vunpack.c.l.b16 %v183
  %v316 = vunpack.c.l.b16 %v184
  %v317 = vunpack.c.l.b16 %v185
  %v318 = vunpack.c.l.b16 %v186
  %v319 = vunpack.c.l.b16 %v187
  %v320 = vunpack.c.l.b16 %v188
  %v321 = vunpack.c.l.b16 %v189
  %v322 = vunpack.c.l.b16 %v190
  %v323 = vunpack.c.l.b16 %v191
  %v324 = vunpack.c.l.b16 %v192
  %v325 = vunpack.c.l.b16 %v193
  %v326 = vunpack.c.l.b16 %v194
  %v327 = vunpack.c.l.b16 %v195
  %v328 = vunpack.c.l.b16 %v196
  %v329 = vunpack.c.l.b16 %v197
  %v330 = vunpack.c.l.b16 %v198
  %v331 = vunpack.c.l.b16 %v199
  %v332 = vunpack.c.l.b16 %v200
  %v333 = vunpack.c.l.b16 %v201
  %v334 = vunpack.c.l.b16 %v202
  %v335 = vunpack.c.l.b16 %v203
  %v336 = vunpack.c.l.b16 %v204
  %v337 = vunpack.c.l.b16 %v205
  %v338 = vunpack.c.l.b16 %v206
  %v339 = vunpack.c.l.b16 %v207
  %v340 = vunpack.c.l.b16 %v208
  %v341 = vunpack.c.l.b16 %v209
  %v342 = vunpack.c.l.b16 %v210
  %v343 = vunpack.c.l.b16 %v211
  %v344 = vunpack.c.l.b16 %v212
  %v345 = vunpack.c.l.b16 %v213
  %v346 = vunpack.c.l.b16 %v214
  %v347 = vpack.c.b16 %v284, %v283
  %v348 = vpack.c.b16 %v286, %v285
  %v349 = vpack.c.b16 %v288, %v287
  %v350 = vpack.c.b16 %v290, %v289
  %v351 = vpack.c.b16 %v292, %v291
  %v352 = vpack.c.b16 %v294, %v293
  %v353 = vpack.c.b16 %v296, %v295
  %v354 = vpack.c.b16 %v298, %v297
  %v355 = vpack.c.b16 %v300, %v299
  %v356 = vpack.c.b16 %v302, %v301
  %v357 = vpack.c.b16 %v304, %v303
  %v358 = vpack.c.b16 %v306, %v305
  %v359 = vpack.c.b16 %v308, %v307
  %v360 = vpack.c.b16 %v310, %v309
  %v361 = vpack.c.b16 %v312, %v311
  %v362 = vpack.c.b16 %v314, %v313
  %v363 = vpack.c.b16 %v316, %v315
  %v364 = vpack.c.b16 %v318, %v317
  %v365 = vpack.c.b16 %v320, %v319
  %v366 = vpack.c.b16 %v322, %v321
  %v367 = vpack.c.b16 %v324, %v323
  %v368 = vpack.c.b16 %v326, %v325
  %v369 = vpack.c.b16 %v328, %v327
  %v370 = vpack.c.b16 %v330, %v329
  %v371 = vpack.c.b16 %v332, %v331
  %v372 = vpack.c.b16 %v334, %v333
  %v373 = vpack.c.b16 %v336, %v335
  %v374 = vpack.c.b16 %v338, %v337
  %v375 = vpack.c.b16 %v340, %v339
  %v376 = vpack.c.b16 %v342, %v341
  %v377 = vpack.c.b16 %v344, %v343
  %v378 = vpack.c.b16 %v346, %v345
  %v383 = vunpack.c.l.b16 %v215
  %v384 = vunpack.c.l.b16 %v216
  %v385 = vunpack.c.l.b16 %v217
  %v386 = vunpack.c.l.b16 %v218
  %v387 = vpack.c.b16 %v384, %v383
  %v388 = vpack.c.b16 %v386, %v385
  %vm390 = vcmask 220160
  %v392 = vsel %vm390, %v347, 0
  %v395 = vsel %vm390, %v348, 0
  %v398 = vsel %vm390, %v349, 0
  %v401 = vsel %vm390, %v350, 0
  %v404 = vsel %vm390, %v351, 0
  %v407 = vsel %vm390, %v352, 0
  %v410 = vsel %vm390, %v353, 0
  %v413 = vsel %vm390, %v354, 0
  %v416 = vsel %vm390, %v355, 0
  %v419 = vsel %vm390, %v356, 0
  %v422 = vsel %vm390, %v357, 0
  %v425 = vsel %vm390, %v358, 0
  %v428 = vsel %vm390, %v359, 0
  %v431 = vsel %vm390, %v360, 0
  %v434 = vsel %vm390, %v361, 0
  %v437 = vsel %vm390, %v362, 0
  %v440 = vsel %vm390, %v363, 0
  %v443 = vsel %vm390, %v364, 0
  %v446 = vsel %vm390, %v365, 0
  %v449 = vsel %vm390, %v366, 0
  %v452 = vsel %vm390, %v367, 0
  %v455 = vsel %vm390, %v368, 0
  %v458 = vsel %vm390, %v369, 0
  %v461 = vsel %vm390, %v370, 0
  %v464 = vsel %vm390, %v371, 0
  %v467 = vsel %vm390, %v372, 0
  %v470 = vsel %vm390, %v373, 0
  %v473 = vsel %vm390, %v374, 0
  %v476 = vsel %vm390, %v375, 0
  %v479 = vsel %vm390, %v376, 0
  %v482 = vsel %vm390, %v377, 0
  %v485 = vsel %vm390, %v378, 0
  %vm487 = vcmask 1044480
  %vm488 = vcmask 1045504
  %v489 = vsel %vm487, 4294967295, 65535
  %v490 = vsel %vm488, %v489, 0
  %v492 = vand.u32 %v388, %v490
  %494 = vmatprep.subr.bf16.mxu0 0
  %495 = vmatpush1.bf16.msra.mxu0 %v387
  %496 = vmatprep.subr.bf16.mxu0 0
  %497 = vmatpush1.bf16.msra.mxu0 %v492
  %498 = vmatprep.subr.bf16.mxu0 0
  %499 = vmatpush1.bf16.msra.mxu0 0
  %500 = vmatprep.subr.bf16.mxu0 0
  %501 = vmatpush1.bf16.msra.mxu0 0
  %502 = vmatprep.subr.bf16.mxu0 0
  %503 = vmatpush1.bf16.msra.mxu0 0
  %504 = vmatprep.subr.bf16.mxu0 0
  %505 = vmatpush1.bf16.msra.mxu0 0
  %506 = vmatprep.subr.bf16.mxu0 0
  %507 = vmatpush1.bf16.msra.mxu0 0
  %508 = vmatprep.subr.bf16.mxu0 0
  %509 = vmatpush1.bf16.msra.mxu0 0
  %510 = vmatprep.subr.bf16.mxu0 0
  %511 = vmatpush1.bf16.msra.mxu0 0
  %512 = vmatprep.subr.bf16.mxu0 0
  %513 = vmatpush1.bf16.msra.mxu0 0
  %514 = vmatprep.subr.bf16.mxu0 0
  %515 = vmatpush1.bf16.msra.mxu0 0
  %516 = vmatprep.subr.bf16.mxu0 0
  %517 = vmatpush1.bf16.msra.mxu0 0
  %518 = vmatprep.subr.bf16.mxu0 0
  %519 = vmatpush1.bf16.msra.mxu0 0
  %520 = vmatprep.subr.bf16.mxu0 0
  %521 = vmatpush1.bf16.msra.mxu0 0
  %522 = vmatprep.subr.bf16.mxu0 0
  %523 = vmatpush1.bf16.msra.mxu0 0
  %524 = vmatprep.subr.bf16.mxu0 0
  %525 = vmatpush1.bf16.msra.mxu0 0
  %526 = vmatprep.mubr.bf16.mxu0 0
  %527 = vmatmul.mubr.bf16.gmra.mrb[0].mxu0 %v392
  %v528 = vpop.f32.mrb[0].mxu0
  %v529 = vadd.f32 0.0, %v528
  %v530 = vpop.f32.mrb[0].mxu0
  %v531 = vpop.f32.mrb[0].mxu0
  %v532 = vadd.f32 0.0, %v531
  %v533 = vpop.f32.mrb[0].mxu0
  %534 = vmatprep.mubr.bf16.mxu0 0
  %535 = vmatmul.mubr.bf16.gmra.mrb[0].mxu0 %v395
  %v536 = vpop.f32.mrb[0].mxu0
  %v537 = vadd.f32 0.0, %v536
  %v538 = vpop.f32.mrb[0].mxu0
  %v539 = vpop.f32.mrb[0].mxu0
  %v540 = vadd.f32 0.0, %v539
  %v541 = vpop.f32.mrb[0].mxu0
  %542 = vmatprep.mubr.bf16.mxu0 0
  %543 = vmatmul.mubr.bf16.gmra.mrb[0].mxu0 %v398
  %v544 = vpop.f32.mrb[0].mxu0
  %v545 = vadd.f32 0.0, %v544
  %v546 = vpop.f32.mrb[0].mxu0
  %v547 = vpop.f32.mrb[0].mxu0
  %v548 = vadd.f32 0.0, %v547
  %v549 = vpop.f32.mrb[0].mxu0
  %550 = vmatprep.mubr.bf16.mxu0 0
  %551 = vmatmul.mubr.bf16.gmra.mrb[0].mxu0 %v401
  %v552 = vpop.f32.mrb[0].mxu0
  %v553 = vadd.f32 0.0, %v552
  %v554 = vpop.f32.mrb[0].mxu0
  %v555 = vpop.f32.mrb[0].mxu0
  %v556 = vadd.f32 0.0, %v555
  %v557 = vpop.f32.mrb[0].mxu0
  %558 = vmatprep.mubr.bf16.mxu0 0
  %559 = vmatmul.mubr.bf16.gmra.mrb[0].mxu0 %v404
  %v560 = vpop.f32.mrb[0].mxu0
  %v561 = vadd.f32 0.0, %v560
  %v562 = vpop.f32.mrb[0].mxu0
  %v563 = vpop.f32.mrb[0].mxu0
  %v564 = vadd.f32 0.0, %v563
  %v565 = vpop.f32.mrb[0].mxu0
  %566 = vmatprep.mubr.bf16.mxu0 0
  %567 = vmatmul.mubr.bf16.gmra.mrb[0].mxu0 %v407
  %v568 = vpop.f32.mrb[0].mxu0
  %v569 = vadd.f32 0.0, %v568
  %v570 = vpop.f32.mrb[0].mxu0
  %v571 = vpop.f32.mrb[0].mxu0
  %v572 = vadd.f32 0.0, %v571
  %v573 = vpop.f32.mrb[0].mxu0
  %574 = vmatprep.mubr.bf16.mxu0 0
  %575 = vmatmul.mubr.bf16.gmra.mrb[0].mxu0 %v410
  %v576 = vpop.f32.mrb[0].mxu0
  %v577 = vadd.f32 0.0, %v576
  %v578 = vpop.f32.mrb[0].mxu0
  %v579 = vpop.f32.mrb[0].mxu0
  %v580 = vadd.f32 0.0, %v579
  %v581 = vpop.f32.mrb[0].mxu0
  %582 = vmatprep.mubr.bf16.mxu0 0
  %583 = vmatmul.mubr.bf16.gmra.mrb[0].mxu0 %v413
  %v584 = vpop.f32.mrb[0].mxu0
  %v585 = vadd.f32 0.0, %v584
  %v586 = vpop.f32.mrb[0].mxu0
  %v587 = vpop.f32.mrb[0].mxu0
  %v588 = vadd.f32 0.0, %v587
  %v589 = vpop.f32.mrb[0].mxu0
  %590 = vmatprep.mubr.bf16.mxu0 0
  %591 = vmatmul.mubr.bf16.gmra.mrb[0].mxu0 %v416
  %v592 = vpop.f32.mrb[0].mxu0
  %v593 = vadd.f32 0.0, %v592
  %v594 = vpop.f32.mrb[0].mxu0
  %v595 = vpop.f32.mrb[0].mxu0
  %v596 = vadd.f32 0.0, %v595
  %v597 = vpop.f32.mrb[0].mxu0
  %598 = vmatprep.mubr.bf16.mxu0 0
  %599 = vmatmul.mubr.bf16.gmra.mrb[0].mxu0 %v419
  %v600 = vpop.f32.mrb[0].mxu0
  %v601 = vadd.f32 0.0, %v600
  %v602 = vpop.f32.mrb[0].mxu0
  %v603 = vpop.f32.mrb[0].mxu0
  %v604 = vadd.f32 0.0, %v603
  %v605 = vpop.f32.mrb[0].mxu0
  %606 = vmatprep.mubr.bf16.mxu0 0
  %607 = vmatmul.mubr.bf16.gmra.mrb[0].mxu0 %v422
  %v608 = vpop.f32.mrb[0].mxu0
  %v609 = vadd.f32 0.0, %v608
  %v610 = vpop.f32.mrb[0].mxu0
  %v611 = vpop.f32.mrb[0].mxu0
  %v612 = vadd.f32 0.0, %v611
  %v613 = vpop.f32.mrb[0].mxu0
  %614 = vmatprep.mubr.bf16.mxu0 0
  %615 = vmatmul.mubr.bf16.gmra.mrb[0].mxu0 %v425
  %v616 = vpop.f32.mrb[0].mxu0
  %v617 = vadd.f32 0.0, %v616
  %v618 = vpop.f32.mrb[0].mxu0
  %v619 = vpop.f32.mrb[0].mxu0
  %v620 = vadd.f32 0.0, %v619
  %v621 = vpop.f32.mrb[0].mxu0
  %622 = vmatprep.mubr.bf16.mxu0 0
  %623 = vmatmul.mubr.bf16.gmra.mrb[0].mxu0 %v428
  %v624 = vpop.f32.mrb[0].mxu0
  %v625 = vadd.f32 0.0, %v624
  %v626 = vpop.f32.mrb[0].mxu0
  %v627 = vpop.f32.mrb[0].mxu0
  %v628 = vadd.f32 0.0, %v627
  %v629 = vpop.f32.mrb[0].mxu0
  %630 = vmatprep.mubr.bf16.mxu0 0
  %631 = vmatmul.mubr.bf16.gmra.mrb[0].mxu0 %v431
  %v632 = vpop.f32.mrb[0].mxu0
  %v633 = vadd.f32 0.0, %v632
  %v634 = vpop.f32.mrb[0].mxu0
  %v635 = vpop.f32.mrb[0].mxu0
  %v636 = vadd.f32 0.0, %v635
  %v637 = vpop.f32.mrb[0].mxu0
  %638 = vmatprep.mubr.bf16.mxu0 0
  %639 = vmatmul.mubr.bf16.gmra.mrb[0].mxu0 %v434
  %v640 = vpop.f32.mrb[0].mxu0
  %v641 = vadd.f32 0.0, %v640
  %v642 = vpop.f32.mrb[0].mxu0
  %v643 = vpop.f32.mrb[0].mxu0
  %v644 = vadd.f32 0.0, %v643
  %v645 = vpop.f32.mrb[0].mxu0
  %646 = vmatprep.mubr.bf16.mxu0 0
  %647 = vmatmul.mubr.bf16.gmra.mrb[0].mxu0 %v437
  %v648 = vpop.f32.mrb[0].mxu0
  %v649 = vadd.f32 0.0, %v648
  %v650 = vpop.f32.mrb[0].mxu0
  %v651 = vpop.f32.mrb[0].mxu0
  %v652 = vadd.f32 0.0, %v651
  %v653 = vpop.f32.mrb[0].mxu0
  %654 = vmatprep.mubr.bf16.mxu0 0
  %655 = vmatmul.mubr.bf16.gmra.mrb[0].mxu0 %v440
  %v656 = vpop.f32.mrb[0].mxu0
  %v657 = vadd.f32 0.0, %v656
  %v658 = vpop.f32.mrb[0].mxu0
  %v659 = vpop.f32.mrb[0].mxu0
  %v660 = vadd.f32 0.0, %v659
  %v661 = vpop.f32.mrb[0].mxu0
  %662 = vmatprep.mubr.bf16.mxu0 0
  %663 = vmatmul.mubr.bf16.gmra.mrb[0].mxu0 %v443
  %v664 = vpop.f32.mrb[0].mxu0
  %v665 = vadd.f32 0.0, %v664
  %v666 = vpop.f32.mrb[0].mxu0
  %v667 = vpop.f32.mrb[0].mxu0
  %v668 = vadd.f32 0.0, %v667
  %v669 = vpop.f32.mrb[0].mxu0
  %670 = vmatprep.mubr.bf16.mxu0 0
  %671 = vmatmul.mubr.bf16.gmra.mrb[0].mxu0 %v446
  %v672 = vpop.f32.mrb[0].mxu0
  %v673 = vadd.f32 0.0, %v672
  %v674 = vpop.f32.mrb[0].mxu0
  %v675 = vpop.f32.mrb[0].mxu0
  %v676 = vadd.f32 0.0, %v675
  %v677 = vpop.f32.mrb[0].mxu0
  %678 = vmatprep.mubr.bf16.mxu0 0
  %679 = vmatmul.mubr.bf16.gmra.mrb[0].mxu0 %v449
  %v680 = vpop.f32.mrb[0].mxu0
  %v681 = vadd.f32 0.0, %v680
  %v682 = vpop.f32.mrb[0].mxu0
  %v683 = vpop.f32.mrb[0].mxu0
  %v684 = vadd.f32 0.0, %v683
  %v685 = vpop.f32.mrb[0].mxu0
  %686 = vmatprep.mubr.bf16.mxu0 0
  %687 = vmatmul.mubr.bf16.gmra.mrb[0].mxu0 %v452
  %v688 = vpop.f32.mrb[0].mxu0
  %v689 = vadd.f32 0.0, %v688
  %v690 = vpop.f32.mrb[0].mxu0
  %v691 = vpop.f32.mrb[0].mxu0
  %v692 = vadd.f32 0.0, %v691
  %v693 = vpop.f32.mrb[0].mxu0
  %694 = vmatprep.mubr.bf16.mxu0 0
  %695 = vmatmul.mubr.bf16.gmra.mrb[0].mxu0 %v455
  %v696 = vpop.f32.mrb[0].mxu0
  %v697 = vadd.f32 0.0, %v696
  %v698 = vpop.f32.mrb[0].mxu0
  %v699 = vpop.f32.mrb[0].mxu0
  %v700 = vadd.f32 0.0, %v699
  %v701 = vpop.f32.mrb[0].mxu0
  %702 = vmatprep.mubr.bf16.mxu0 0
  %703 = vmatmul.mubr.bf16.gmra.mrb[0].mxu0 %v458
  %v704 = vpop.f32.mrb[0].mxu0
  %v705 = vadd.f32 0.0, %v704
  %v706 = vpop.f32.mrb[0].mxu0
  %v707 = vpop.f32.mrb[0].mxu0
  %v708 = vadd.f32 0.0, %v707
  %v709 = vpop.f32.mrb[0].mxu0
  %710 = vmatprep.mubr.bf16.mxu0 0
  %711 = vmatmul.mubr.bf16.gmra.mrb[0].mxu0 %v461
  %v712 = vpop.f32.mrb[0].mxu0
  %v713 = vadd.f32 0.0, %v712
  %v714 = vpop.f32.mrb[0].mxu0
  %v715 = vpop.f32.mrb[0].mxu0
  %v716 = vadd.f32 0.0, %v715
  %v717 = vpop.f32.mrb[0].mxu0
  %718 = vmatprep.mubr.bf16.mxu0 0
  %719 = vmatmul.mubr.bf16.gmra.mrb[0].mxu0 %v464
  %v720 = vpop.f32.mrb[0].mxu0
  %v721 = vadd.f32 0.0, %v720
  %v722 = vpop.f32.mrb[0].mxu0
  %v723 = vpop.f32.mrb[0].mxu0
  %v724 = vadd.f32 0.0, %v723
  %v725 = vpop.f32.mrb[0].mxu0
  %726 = vmatprep.mubr.bf16.mxu0 0
  %727 = vmatmul.mubr.bf16.gmra.mrb[0].mxu0 %v467
  %v728 = vpop.f32.mrb[0].mxu0
  %v729 = vadd.f32 0.0, %v728
  %v730 = vpop.f32.mrb[0].mxu0
  %v731 = vpop.f32.mrb[0].mxu0
  %v732 = vadd.f32 0.0, %v731
  %v733 = vpop.f32.mrb[0].mxu0
  %734 = vmatprep.mubr.bf16.mxu0 0
  %735 = vmatmul.mubr.bf16.gmra.mrb[0].mxu0 %v470
  %v736 = vpop.f32.mrb[0].mxu0
  %v737 = vadd.f32 0.0, %v736
  %v738 = vpop.f32.mrb[0].mxu0
  %v739 = vpop.f32.mrb[0].mxu0
  %v740 = vadd.f32 0.0, %v739
  %v741 = vpop.f32.mrb[0].mxu0
  %742 = vmatprep.mubr.bf16.mxu0 0
  %743 = vmatmul.mubr.bf16.gmra.mrb[0].mxu0 %v473
  %v744 = vpop.f32.mrb[0].mxu0
  %v745 = vadd.f32 0.0, %v744
  %v746 = vpop.f32.mrb[0].mxu0
  %v747 = vpop.f32.mrb[0].mxu0
  %v748 = vadd.f32 0.0, %v747
  %v749 = vpop.f32.mrb[0].mxu0
  %750 = vmatprep.mubr.bf16.mxu0 0
  %751 = vmatmul.mubr.bf16.gmra.mrb[0].mxu0 %v476
  %v752 = vpop.f32.mrb[0].mxu0
  %v753 = vadd.f32 0.0, %v752
  %v754 = vpop.f32.mrb[0].mxu0
  %v755 = vpop.f32.mrb[0].mxu0
  %v756 = vadd.f32 0.0, %v755
  %v757 = vpop.f32.mrb[0].mxu0
  %758 = vmatprep.mubr.bf16.mxu0 0
  %759 = vmatmul.mubr.bf16.gmra.mrb[0].mxu0 %v479
  %v760 = vpop.f32.mrb[0].mxu0
  %v761 = vadd.f32 0.0, %v760
  %v762 = vpop.f32.mrb[0].mxu0
  %v763 = vpop.f32.mrb[0].mxu0
  %v764 = vadd.f32 0.0, %v763
  %v765 = vpop.f32.mrb[0].mxu0
  %766 = vmatprep.mubr.bf16.mxu0 0
  %767 = vmatmul.mubr.bf16.gmra.mrb[0].mxu0 %v482
  %v768 = vpop.f32.mrb[0].mxu0
  %v769 = vadd.f32 0.0, %v768
  %v770 = vpop.f32.mrb[0].mxu0
  %v771 = vpop.f32.mrb[0].mxu0
  %v772 = vadd.f32 0.0, %v771
  %v773 = vpop.f32.mrb[0].mxu0
  %774 = vmatprep.mubr.bf16.mxu0 0
  %775 = vmatmul.mubr.bf16.gmra.mrb[0].mxu0 %v485
  %v776 = vpop.f32.mrb[0].mxu0
  %v777 = vadd.f32 0.0, %v776
  %v778 = vpop.f32.mrb[0].mxu0
  %v779 = vpop.f32.mrb[0].mxu0
  %v780 = vadd.f32 0.0, %v779
  %v781 = vpop.f32.mrb[0].mxu0
  %782 = vdwg.mxu0
  %v783 = vadd.f32 %v87, %v529
  %v784 = vadd.f32 %v88, %v532
  %v785 = vadd.f32 %v89, %v537
  %v786 = vadd.f32 %v90, %v540
  %v787 = vadd.f32 %v91, %v545
  %v788 = vadd.f32 %v92, %v548
  %v789 = vadd.f32 %v93, %v553
  %v790 = vadd.f32 %v94, %v556
  %v791 = vadd.f32 %v95, %v561
  %v792 = vadd.f32 %v96, %v564
  %v793 = vadd.f32 %v97, %v569
  %v794 = vadd.f32 %v98, %v572
  %v795 = vadd.f32 %v99, %v577
  %v796 = vadd.f32 %v100, %v580
  %v797 = vadd.f32 %v101, %v585
  %v798 = vadd.f32 %v102, %v588
  %v799 = vadd.f32 %v103, %v593
  %v800 = vadd.f32 %v104, %v596
  %v801 = vadd.f32 %v105, %v601
  %v802 = vadd.f32 %v106, %v604
  %v803 = vadd.f32 %v107, %v609
  %v804 = vadd.f32 %v108, %v612
  %v805 = vadd.f32 %v109, %v617
  %v806 = vadd.f32 %v110, %v620
  %v807 = vadd.f32 %v111, %v625
  %v808 = vadd.f32 %v112, %v628
  %v809 = vadd.f32 %v113, %v633
  %v810 = vadd.f32 %v114, %v636
  %v811 = vadd.f32 %v115, %v641
  %v812 = vadd.f32 %v116, %v644
  %v813 = vadd.f32 %v117, %v649
  %v814 = vadd.f32 %v118, %v652
  %v815 = vadd.f32 %v119, %v657
  %v816 = vadd.f32 %v120, %v660
  %v817 = vadd.f32 %v121, %v665
  %v818 = vadd.f32 %v122, %v668
  %v819 = vadd.f32 %v123, %v673
  %v820 = vadd.f32 %v124, %v676
  %v821 = vadd.f32 %v125, %v681
  %v822 = vadd.f32 %v126, %v684
  %v823 = vadd.f32 %v127, %v689
  %v824 = vadd.f32 %v128, %v692
  %v825 = vadd.f32 %v129, %v697
  %v826 = vadd.f32 %v130, %v700
  %v827 = vadd.f32 %v131, %v705
  %v828 = vadd.f32 %v132, %v708
  %v829 = vadd.f32 %v133, %v713
  %v830 = vadd.f32 %v134, %v716
  %v831 = vadd.f32 %v135, %v721
  %v832 = vadd.f32 %v136, %v724
  %v833 = vadd.f32 %v137, %v729
  %v834 = vadd.f32 %v138, %v732
  %v835 = vadd.f32 %v139, %v737
  %v836 = vadd.f32 %v140, %v740
  %v837 = vadd.f32 %v141, %v745
  %v838 = vadd.f32 %v142, %v748
  %v839 = vadd.f32 %v143, %v753
  %v840 = vadd.f32 %v144, %v756
  %v841 = vadd.f32 %v145, %v761
  %v842 = vadd.f32 %v146, %v764
  %v843 = vadd.f32 %v147, %v769
  %v844 = vadd.f32 %v148, %v772
  %v845 = vadd.f32 %v149, %v777
  %v846 = vadd.f32 %v150, %v780
  %vm847 = vcmask 523264
  %848 = vst.msk [vmem:[#allocation2] sm:$0xff] %vm847, %v783
  %849 = vst.msk [vmem:[#allocation2 + $0x8] sm:$0xff] %vm847, %v784
  %850 = vst.msk [vmem:[#allocation2 + $0x10] sm:$0xff] %vm847, %v785
  %851 = vst.msk [vmem:[#allocation2 + $0x18] sm:$0xff] %vm847, %v786
  %852 = vst.msk [vmem:[#allocation2 + $0x20] sm:$0xff] %vm847, %v787
  %853 = vst.msk [vmem:[#allocation2 + $0x28] sm:$0xff] %vm847, %v788
  %854 = vst.msk [vmem:[#allocation2 + $0x30] sm:$0xff] %vm847, %v789
  %855 = vst.msk [vmem:[#allocation2 + $0x38] sm:$0xff] %vm847, %v790
  %856 = vst.msk [vmem:[#allocation2 + $0x40] sm:$0xff] %vm847, %v791
  %857 = vst.msk [vmem:[#allocation2 + $0x48] sm:$0xff] %vm847, %v792
  %858 = vst.msk [vmem:[#allocation2 + $0x50] sm:$0xff] %vm847, %v793
  %859 = vst.msk [vmem:[#allocation2 + $0x58] sm:$0xff] %vm847, %v794
  %860 = vst.msk [vmem:[#allocation2 + $0x60] sm:$0xff] %vm847, %v795
  %861 = vst.msk [vmem:[#allocation2 + $0x68] sm:$0xff] %vm847, %v796
  %862 = vst.msk [vmem:[#allocation2 + $0x70] sm:$0xff] %vm847, %v797
  %863 = vst.msk [vmem:[#allocation2 + $0x78] sm:$0xff] %vm847, %v798
  %864 = vst.msk [vmem:[#allocation2 + $0x80] sm:$0xff] %vm847, %v799
  %865 = vst.msk [vmem:[#allocation2 + $0x88] sm:$0xff] %vm847, %v800
  %866 = vst.msk [vmem:[#allocation2 + $0x90] sm:$0xff] %vm847, %v801
  %867 = vst.msk [vmem:[#allocation2 + $0x98] sm:$0xff] %vm847, %v802
  %868 = vst.msk [vmem:[#allocation2 + $0xa0] sm:$0xff] %vm847, %v803
  %869 = vst.msk [vmem:[#allocation2 + $0xa8] sm:$0xff] %vm847, %v804
  %870 = vst.msk [vmem:[#allocation2 + $0xb0] sm:$0xff] %vm847, %v805
  %871 = vst.msk [vmem:[#allocation2 + $0xb8] sm:$0xff] %vm847, %v806
  %872 = vst.msk [vmem:[#allocation2 + $0xc0] sm:$0xff] %vm847, %v807
  %873 = vst.msk [vmem:[#allocation2 + $0xc8] sm:$0xff] %vm847, %v808
  %874 = vst.msk [vmem:[#allocation2 + $0xd0] sm:$0xff] %vm847, %v809
  %875 = vst.msk [vmem:[#allocation2 + $0xd8] sm:$0xff] %vm847, %v810
  %876 = vst.msk [vmem:[#allocation2 + $0xe0] sm:$0xff] %vm847, %v811
  %877 = vst.msk [vmem:[#allocation2 + $0xe8] sm:$0xff] %vm847, %v812
  %878 = vst.msk [vmem:[#allocation2 + $0xf0] sm:$0xff] %vm847, %v813
  %879 = vst.msk [vmem:[#allocation2 + $0xf8] sm:$0xff] %vm847, %v814
  %880 = vst.msk [vmem:[#allocation2 + $0x100] sm:$0xff] %vm847, %v815
  %881 = vst.msk [vmem:[#allocation2 + $0x108] sm:$0xff] %vm847, %v816
  %882 = vst.msk [vmem:[#allocation2 + $0x110] sm:$0xff] %vm847, %v817
  %883 = vst.msk [vmem:[#allocation2 + $0x118] sm:$0xff] %vm847, %v818
  %884 = vst.msk [vmem:[#allocation2 + $0x120] sm:$0xff] %vm847, %v819
  %885 = vst.msk [vmem:[#allocation2 + $0x128] sm:$0xff] %vm847, %v820
  %886 = vst.msk [vmem:[#allocation2 + $0x130] sm:$0xff] %vm847, %v821
  %887 = vst.msk [vmem:[#allocation2 + $0x138] sm:$0xff] %vm847, %v822
  %888 = vst.msk [vmem:[#allocation2 + $0x140] sm:$0xff] %vm847, %v823
  %889 = vst.msk [vmem:[#allocation2 + $0x148] sm:$0xff] %vm847, %v824
  %890 = vst.msk [vmem:[#allocation2 + $0x150] sm:$0xff] %vm847, %v825
  %891 = vst.msk [vmem:[#allocation2 + $0x158] sm:$0xff] %vm847, %v826
  %892 = vst.msk [vmem:[#allocation2 + $0x160] sm:$0xff] %vm847, %v827
  %893 = vst.msk [vmem:[#allocation2 + $0x168] sm:$0xff] %vm847, %v828
  %894 = vst.msk [vmem:[#allocation2 + $0x170] sm:$0xff] %vm847, %v829
  %895 = vst.msk [vmem:[#allocation2 + $0x178] sm:$0xff] %vm847, %v830
  %896 = vst.msk [vmem:[#allocation2 + $0x180] sm:$0xff] %vm847, %v831
  %897 = vst.msk [vmem:[#allocation2 + $0x188] sm:$0xff] %vm847, %v832
  %898 = vst.msk [vmem:[#allocation2 + $0x190] sm:$0xff] %vm847, %v833
  %899 = vst.msk [vmem:[#allocation2 + $0x198] sm:$0xff] %vm847, %v834
  %900 = vst.msk [vmem:[#allocation2 + $0x1a0] sm:$0xff] %vm847, %v835
  %901 = vst.msk [vmem:[#allocation2 + $0x1a8] sm:$0xff] %vm847, %v836
  %902 = vst.msk [vmem:[#allocation2 + $0x1b0] sm:$0xff] %vm847, %v837
  %903 = vst.msk [vmem:[#allocation2 + $0x1b8] sm:$0xff] %vm847, %v838
  %904 = vst.msk [vmem:[#allocation2 + $0x1c0] sm:$0xff] %vm847, %v839
  %905 = vst.msk [vmem:[#allocation2 + $0x1c8] sm:$0xff] %vm847, %v840
  %906 = vst.msk [vmem:[#allocation2 + $0x1d0] sm:$0xff] %vm847, %v841
  %907 = vst.msk [vmem:[#allocation2 + $0x1d8] sm:$0xff] %vm847, %v842
  %908 = vst.msk [vmem:[#allocation2 + $0x1e0] sm:$0xff] %vm847, %v843
  %909 = vst.msk [vmem:[#allocation2 + $0x1e8] sm:$0xff] %vm847, %v844
  %910 = vst.msk [vmem:[#allocation2 + $0x1f0] sm:$0xff] %vm847, %v845
  %911 = vst.msk [vmem:[#allocation2 + $0x1f8] sm:$0xff] %vm847, %v846
  // Predicated region
  $region22: #{tpu_custom_call.1} parent=0 // pred_check
    %p912 = pneg %p18
  $region23: #{tpu_custom_call.1} parent=0 // pred_check_branch
    %914 = sbr.rel (%p912) target = $region25
  $region24: #{tpu_custom_call.1} parent=0 // pred_region
    %v915 = vld [vmem:[#allocation2] sm:$0xff]
    %v916 = vld [vmem:[#allocation2 + $0x8] sm:$0xff]
    %v917 = vld [vmem:[#allocation2 + $0x10] sm:$0xff]
    %v918 = vld [vmem:[#allocation2 + $0x18] sm:$0xff]
    %v919 = vld [vmem:[#allocation2 + $0x20] sm:$0xff]
    %v920 = vld [vmem:[#allocation2 + $0x28] sm:$0xff]
    %v921 = vld [vmem:[#allocation2 + $0x30] sm:$0xff]
    %v922 = vld [vmem:[#allocation2 + $0x38] sm:$0xff]
    %v923 = vld [vmem:[#allocation2 + $0x40] sm:$0xff]
    %v924 = vld [vmem:[#allocation2 + $0x48] sm:$0xff]
    %v925 = vld [vmem:[#allocation2 + $0x50] sm:$0xff]
    %v926 = vld [vmem:[#allocation2 + $0x58] sm:$0xff]
    %v927 = vld [vmem:[#allocation2 + $0x60] sm:$0xff]
    %v928 = vld [vmem:[#allocation2 + $0x68] sm:$0xff]
    %v929 = vld [vmem:[#allocation2 + $0x70] sm:$0xff]
    %v930 = vld [vmem:[#allocation2 + $0x78] sm:$0xff]
    %v931 = vld [vmem:[#allocation2 + $0x80] sm:$0xff]
    %v932 = vld [vmem:[#allocation2 + $0x88] sm:$0xff]
    %v933 = vld [vmem:[#allocation2 + $0x90] sm:$0xff]
    %v934 = vld [vmem:[#allocation2 + $0x98] sm:$0xff]
    %v935 = vld [vmem:[#allocation2 + $0xa0] sm:$0xff]
    %v936 = vld [vmem:[#allocation2 + $0xa8] sm:$0xff]
    %v937 = vld [vmem:[#allocation2 + $0xb0] sm:$0xff]
    %v938 = vld [vmem:[#allocation2 + $0xb8] sm:$0xff]
    %v939 = vld [vmem:[#allocation2 + $0xc0] sm:$0xff]
    %v940 = vld [vmem:[#allocation2 + $0xc8] sm:$0xff]
    %v941 = vld [vmem:[#allocation2 + $0xd0] sm:$0xff]
    %v942 = vld [vmem:[#allocation2 + $0xd8] sm:$0xff]
    %v943 = vld [vmem:[#allocation2 + $0xe0] sm:$0xff]
    %v944 = vld [vmem:[#allocation2 + $0xe8] sm:$0xff]
    %v945 = vld [vmem:[#allocation2 + $0xf0] sm:$0xff]
    %v946 = vld [vmem:[#allocation2 + $0xf8] sm:$0xff]
    %v947 = vld [vmem:[#allocation2 + $0x100] sm:$0xff]
    %v948 = vld [vmem:[#allocation2 + $0x108] sm:$0xff]
    %v949 = vld [vmem:[#allocation2 + $0x110] sm:$0xff]
    %v950 = vld [vmem:[#allocation2 + $0x118] sm:$0xff]
    %v951 = vld [vmem:[#allocation2 + $0x120] sm:$0xff]
    %v952 = vld [vmem:[#allocation2 + $0x128] sm:$0xff]
    %v953 = vld [vmem:[#allocation2 + $0x130] sm:$0xff]
    %v954 = vld [vmem:[#allocation2 + $0x138] sm:$0xff]
    %v955 = vld [vmem:[#allocation2 + $0x140] sm:$0xff]
    %v956 = vld [vmem:[#allocation2 + $0x148] sm:$0xff]
    %v957 = vld [vmem:[#allocation2 + $0x150] sm:$0xff]
    %v958 = vld [vmem:[#allocation2 + $0x158] sm:$0xff]
    %v959 = vld [vmem:[#allocation2 + $0x160] sm:$0xff]
    %v960 = vld [vmem:[#allocation2 + $0x168] sm:$0xff]
    %v961 = vld [vmem:[#allocation2 + $0x170] sm:$0xff]
    %v962 = vld [vmem:[#allocation2 + $0x178] sm:$0xff]
    %v963 = vld [vmem:[#allocation2 + $0x180] sm:$0xff]
    %v964 = vld [vmem:[#allocation2 + $0x188] sm:$0xff]
    %v965 = vld [vmem:[#allocation2 + $0x190] sm:$0xff]
    %v966 = vld [vmem:[#allocation2 + $0x198] sm:$0xff]
    %v967 = vld [vmem:[#allocation2 + $0x1a0] sm:$0xff]
    %v968 = vld [vmem:[#allocation2 + $0x1a8] sm:$0xff]
    %v969 = vld [vmem:[#allocation2 + $0x1b0] sm:$0xff]
    %v970 = vld [vmem:[#allocation2 + $0x1b8] sm:$0xff]
    %v971 = vld [vmem:[#allocation2 + $0x1c0] sm:$0xff]
    %v972 = vld [vmem:[#allocation2 + $0x1c8] sm:$0xff]
    %v973 = vld [vmem:[#allocation2 + $0x1d0] sm:$0xff]
    %v974 = vld [vmem:[#allocation2 + $0x1d8] sm:$0xff]
    %v975 = vld [vmem:[#allocation2 + $0x1e0] sm:$0xff]
    %v976 = vld [vmem:[#allocation2 + $0x1e8] sm:$0xff]
    %v977 = vld [vmem:[#allocation2 + $0x1f0] sm:$0xff]
    %v978 = vld [vmem:[#allocation2 + $0x1f8] sm:$0xff]
    %v979 = vld [vmem:[%s2] sm:$0x1]
    %v981 = vlaneseq
    %v982 = vshrl.u32 %v981, 7
    %v983 = vsub.s32 0, %v982
    %v984 = vrot.slane %v979, %v983
    %v986 = vmul.f32 %v915, %v984
    %v987 = vmul.f32 %v916, %v984
    %v988 = vmul.f32 %v917, %v984
    %v989 = vmul.f32 %v918, %v984
    %v990 = vmul.f32 %v919, %v984
    %v991 = vmul.f32 %v920, %v984
    %v992 = vmul.f32 %v921, %v984
    %v993 = vmul.f32 %v922, %v984
    %v994 = vmul.f32 %v923, %v984
    %v995 = vmul.f32 %v924, %v984
    %v996 = vmul.f32 %v925, %v984
    %v997 = vmul.f32 %v926, %v984
    %v998 = vmul.f32 %v927, %v984
    %v999 = vmul.f32 %v928, %v984
    %v1000 = vmul.f32 %v929, %v984
    %v1001 = vmul.f32 %v930, %v984
    %v1002 = vmul.f32 %v931, %v984
    %v1003 = vmul.f32 %v932, %v984
    %v1004 = vmul.f32 %v933, %v984
    %v1005 = vmul.f32 %v934, %v984
    %v1006 = vmul.f32 %v935, %v984
    %v1007 = vmul.f32 %v936, %v984
    %v1008 = vmul.f32 %v937, %v984
    %v1009 = vmul.f32 %v938, %v984
    %v1010 = vmul.f32 %v939, %v984
    %v1011 = vmul.f32 %v940, %v984
    %v1012 = vmul.f32 %v941, %v984
    %v1013 = vmul.f32 %v942, %v984
    %v1014 = vmul.f32 %v943, %v984
    %v1015 = vmul.f32 %v944, %v984
    %v1016 = vmul.f32 %v945, %v984
    %v1017 = vmul.f32 %v946, %v984
    %v1018 = vmul.f32 %v947, %v984
    %v1019 = vmul.f32 %v948, %v984
    %v1020 = vmul.f32 %v949, %v984
    %v1021 = vmul.f32 %v950, %v984
    %v1022 = vmul.f32 %v951, %v984
    %v1023 = vmul.f32 %v952, %v984
    %v1024 = vmul.f32 %v953, %v984
    %v1025 = vmul.f32 %v954, %v984
    %v1026 = vmul.f32 %v955, %v984
    %v1027 = vmul.f32 %v956, %v984
    %v1028 = vmul.f32 %v957, %v984
    %v1029 = vmul.f32 %v958, %v984
    %v1030 = vmul.f32 %v959, %v984
    %v1031 = vmul.f32 %v960, %v984
    %v1032 = vmul.f32 %v961, %v984
    %v1033 = vmul.f32 %v962, %v984
    %v1034 = vmul.f32 %v963, %v984
    %v1035 = vmul.f32 %v964, %v984
    %v1036 = vmul.f32 %v965, %v984
    %v1037 = vmul.f32 %v966, %v984
    %v1038 = vmul.f32 %v967, %v984
    %v1039 = vmul.f32 %v968, %v984
    %v1040 = vmul.f32 %v969, %v984
    %v1041 = vmul.f32 %v970, %v984
    %v1042 = vmul.f32 %v971, %v984
    %v1043 = vmul.f32 %v972, %v984
    %v1044 = vmul.f32 %v973, %v984
    %v1045 = vmul.f32 %v974, %v984
    %v1046 = vmul.f32 %v975, %v984
    %v1047 = vmul.f32 %v976, %v984
    %v1048 = vmul.f32 %v977, %v984
    %v1049 = vmul.f32 %v978, %v984
    %v1050 = vld [vmem:[%s3] sm:$0x1]
    %v1052 = vlaneseq
    %v1053 = vshrl.u32 %v1052, 7
    %v1054 = vsub.s32 0, %v1053
    %v1055 = vrot.slane %v1050, %v1054
    %v1057 = vadd.f32 %v986, %v1055
    %v1058 = vadd.f32 %v987, %v1055
    %v1059 = vadd.f32 %v988, %v1055
    %v1060 = vadd.f32 %v989, %v1055
    %v1061 = vadd.f32 %v990, %v1055
    %v1062 = vadd.f32 %v991, %v1055
    %v1063 = vadd.f32 %v992, %v1055
    %v1064 = vadd.f32 %v993, %v1055
    %v1065 = vadd.f32 %v994, %v1055
    %v1066 = vadd.f32 %v995, %v1055
    %v1067 = vadd.f32 %v996, %v1055
    %v1068 = vadd.f32 %v997, %v1055
    %v1069 = vadd.f32 %v998, %v1055
    %v1070 = vadd.f32 %v999, %v1055
    %v1071 = vadd.f32 %v1000, %v1055
    %v1072 = vadd.f32 %v1001, %v1055
    %v1073 = vadd.f32 %v1002, %v1055
    %v1074 = vadd.f32 %v1003, %v1055
    %v1075 = vadd.f32 %v1004, %v1055
    %v1076 = vadd.f32 %v1005, %v1055
    %v1077 = vadd.f32 %v1006, %v1055
    %v1078 = vadd.f32 %v1007, %v1055
    %v1079 = vadd.f32 %v1008, %v1055
    %v1080 = vadd.f32 %v1009, %v1055
    %v1081 = vadd.f32 %v1010, %v1055
    %v1082 = vadd.f32 %v1011, %v1055
    %v1083 = vadd.f32 %v1012, %v1055
    %v1084 = vadd.f32 %v1013, %v1055
    %v1085 = vadd.f32 %v1014, %v1055
    %v1086 = vadd.f32 %v1015, %v1055
    %v1087 = vadd.f32 %v1016, %v1055
    %v1088 = vadd.f32 %v1017, %v1055
    %v1089 = vadd.f32 %v1018, %v1055
    %v1090 = vadd.f32 %v1019, %v1055
    %v1091 = vadd.f32 %v1020, %v1055
    %v1092 = vadd.f32 %v1021, %v1055
    %v1093 = vadd.f32 %v1022, %v1055
    %v1094 = vadd.f32 %v1023, %v1055
    %v1095 = vadd.f32 %v1024, %v1055
    %v1096 = vadd.f32 %v1025, %v1055
    %v1097 = vadd.f32 %v1026, %v1055
    %v1098 = vadd.f32 %v1027, %v1055
    %v1099 = vadd.f32 %v1028, %v1055
    %v1100 = vadd.f32 %v1029, %v1055
    %v1101 = vadd.f32 %v1030, %v1055
    %v1102 = vadd.f32 %v1031, %v1055
    %v1103 = vadd.f32 %v1032, %v1055
    %v1104 = vadd.f32 %v1033, %v1055
    %v1105 = vadd.f32 %v1034, %v1055
    %v1106 = vadd.f32 %v1035, %v1055
    %v1107 = vadd.f32 %v1036, %v1055
    %v1108 = vadd.f32 %v1037, %v1055
    %v1109 = vadd.f32 %v1038, %v1055
    %v1110 = vadd.f32 %v1039, %v1055
    %v1111 = vadd.f32 %v1040, %v1055
    %v1112 = vadd.f32 %v1041, %v1055
    %v1113 = vadd.f32 %v1042, %v1055
    %v1114 = vadd.f32 %v1043, %v1055
    %v1115 = vadd.f32 %v1044, %v1055
    %v1116 = vadd.f32 %v1045, %v1055
    %v1117 = vadd.f32 %v1046, %v1055
    %v1118 = vadd.f32 %v1047, %v1055
    %v1119 = vadd.f32 %v1048, %v1055
    %v1120 = vadd.f32 %v1049, %v1055
    %v1121 = vmul.f32 %v1057, 0.5
    %v1122 = vmul.f32 %v1058, 0.5
    %v1123 = vmul.f32 %v1059, 0.5
    %v1124 = vmul.f32 %v1060, 0.5
    %v1125 = vmul.f32 %v1061, 0.5
    %v1126 = vmul.f32 %v1062, 0.5
    %v1127 = vmul.f32 %v1063, 0.5
    %v1128 = vmul.f32 %v1064, 0.5
    %v1129 = vmul.f32 %v1065, 0.5
    %v1130 = vmul.f32 %v1066, 0.5
    %v1131 = vmul.f32 %v1067, 0.5
    %v1132 = vmul.f32 %v1068, 0.5
    %v1133 = vmul.f32 %v1069, 0.5
    %v1134 = vmul.f32 %v1070, 0.5
    %v1135 = vmul.f32 %v1071, 0.5
    %v1136 = vmul.f32 %v1072, 0.5
    %v1137 = vmul.f32 %v1073, 0.5
    %v1138 = vmul.f32 %v1074, 0.5
    %v1139 = vmul.f32 %v1075, 0.5
    %v1140 = vmul.f32 %v1076, 0.5
    %v1141 = vmul.f32 %v1077, 0.5
    %v1142 = vmul.f32 %v1078, 0.5
    %v1143 = vmul.f32 %v1079, 0.5
    %v1144 = vmul.f32 %v1080, 0.5
    %v1145 = vmul.f32 %v1081, 0.5
    %v1146 = vmul.f32 %v1082, 0.5
    %v1147 = vmul.f32 %v1083, 0.5
    %v1148 = vmul.f32 %v1084, 0.5
    %v1149 = vmul.f32 %v1085, 0.5
    %v1150 = vmul.f32 %v1086, 0.5
    %v1151 = vmul.f32 %v1087, 0.5
    %v1152 = vmul.f32 %v1088, 0.5
    %v1153 = vmul.f32 %v1089, 0.5
    %v1154 = vmul.f32 %v1090, 0.5
    %v1155 = vmul.f32 %v1091, 0.5
    %v1156 = vmul.f32 %v1092, 0.5
    %v1157 = vmul.f32 %v1093, 0.5
    %v1158 = vmul.f32 %v1094, 0.5
    %v1159 = vmul.f32 %v1095, 0.5
    %v1160 = vmul.f32 %v1096, 0.5
    %v1161 = vmul.f32 %v1097, 0.5
    %v1162 = vmul.f32 %v1098, 0.5
    %v1163 = vmul.f32 %v1099, 0.5
    %v1164 = vmul.f32 %v1100, 0.5
    %v1165 = vmul.f32 %v1101, 0.5
    %v1166 = vmul.f32 %v1102, 0.5
    %v1167 = vmul.f32 %v1103, 0.5
    %v1168 = vmul.f32 %v1104, 0.5
    %v1169 = vmul.f32 %v1105, 0.5
    %v1170 = vmul.f32 %v1106, 0.5
    %v1171 = vmul.f32 %v1107, 0.5
    %v1172 = vmul.f32 %v1108, 0.5
    %v1173 = vmul.f32 %v1109, 0.5
    %v1174 = vmul.f32 %v1110, 0.5
    %v1175 = vmul.f32 %v1111, 0.5
    %v1176 = vmul.f32 %v1112, 0.5
    %v1177 = vmul.f32 %v1113, 0.5
    %v1178 = vmul.f32 %v1114, 0.5
    %v1179 = vmul.f32 %v1115, 0.5
    %v1180 = vmul.f32 %v1116, 0.5
    %v1181 = vmul.f32 %v1117, 0.5
    %v1182 = vmul.f32 %v1118, 0.5
    %v1183 = vmul.f32 %v1119, 0.5
    %v1184 = vmul.f32 %v1120, 0.5
    %v1185 = vmul.f32 %v1057, 0.044715
    %v1186 = vmul.f32 %v1058, 0.044715
    %v1187 = vmul.f32 %v1059, 0.044715
    %v1188 = vmul.f32 %v1060, 0.044715
    %v1189 = vmul.f32 %v1061, 0.044715
    %v1190 = vmul.f32 %v1062, 0.044715
    %v1191 = vmul.f32 %v1063, 0.044715
    %v1192 = vmul.f32 %v1064, 0.044715
    %v1193 = vmul.f32 %v1065, 0.044715
    %v1194 = vmul.f32 %v1066, 0.044715
    %v1195 = vmul.f32 %v1067, 0.044715
    %v1196 = vmul.f32 %v1068, 0.044715
    %v1197 = vmul.f32 %v1069, 0.044715
    %v1198 = vmul.f32 %v1070, 0.044715
    %v1199 = vmul.f32 %v1071, 0.044715
    %v1200 = vmul.f32 %v1072, 0.044715
    %v1201 = vmul.f32 %v1073, 0.044715
    %v1202 = vmul.f32 %v1074, 0.044715
    %v1203 = vmul.f32 %v1075, 0.044715
    %v1204 = vmul.f32 %v1076, 0.044715
    %v1205 = vmul.f32 %v1077, 0.044715
    %v1206 = vmul.f32 %v1078, 0.044715
    %v1207 = vmul.f32 %v1079, 0.044715
    %v1208 = vmul.f32 %v1080, 0.044715
    %v1209 = vmul.f32 %v1081, 0.044715
    %v1210 = vmul.f32 %v1082, 0.044715
    %v1211 = vmul.f32 %v1083, 0.044715
    %v1212 = vmul.f32 %v1084, 0.044715
    %v1213 = vmul.f32 %v1085, 0.044715
    %v1214 = vmul.f32 %v1086, 0.044715
    %v1215 = vmul.f32 %v1087, 0.044715
    %v1216 = vmul.f32 %v1088, 0.044715
    %v1217 = vmul.f32 %v1089, 0.044715
    %v1218 = vmul.f32 %v1090, 0.044715
    %v1219 = vmul.f32 %v1091, 0.044715
    %v1220 = vmul.f32 %v1092, 0.044715
    %v1221 = vmul.f32 %v1093, 0.044715
    %v1222 = vmul.f32 %v1094, 0.044715
    %v1223 = vmul.f32 %v1095, 0.044715
    %v1224 = vmul.f32 %v1096, 0.044715
    %v1225 = vmul.f32 %v1097, 0.044715
    %v1226 = vmul.f32 %v1098, 0.044715
    %v1227 = vmul.f32 %v1099, 0.044715
    %v1228 = vmul.f32 %v1100, 0.044715
    %v1229 = vmul.f32 %v1101, 0.044715
    %v1230 = vmul.f32 %v1102, 0.044715
    %v1231 = vmul.f32 %v1103, 0.044715
    %v1232 = vmul.f32 %v1104, 0.044715
    %v1233 = vmul.f32 %v1105, 0.044715
    %v1234 = vmul.f32 %v1106, 0.044715
    %v1235 = vmul.f32 %v1107, 0.044715
    %v1236 = vmul.f32 %v1108, 0.044715
    %v1237 = vmul.f32 %v1109, 0.044715
    %v1238 = vmul.f32 %v1110, 0.044715
    %v1239 = vmul.f32 %v1111, 0.044715
    %v1240 = vmul.f32 %v1112, 0.044715
    %v1241 = vmul.f32 %v1113, 0.044715
    %v1242 = vmul.f32 %v1114, 0.044715
    %v1243 = vmul.f32 %v1115, 0.044715
    %v1244 = vmul.f32 %v1116, 0.044715
    %v1245 = vmul.f32 %v1117, 0.044715
    %v1246 = vmul.f32 %v1118, 0.044715
    %v1247 = vmul.f32 %v1119, 0.044715
    %v1248 = vmul.f32 %v1120, 0.044715
    %v1249 = vmul.f32 %v1185, %v1057
    %v1250 = vmul.f32 %v1186, %v1058
    %v1251 = vmul.f32 %v1187, %v1059
    %v1252 = vmul.f32 %v1188, %v1060
    %v1253 = vmul.f32 %v1189, %v1061
    %v1254 = vmul.f32 %v1190, %v1062
    %v1255 = vmul.f32 %v1191, %v1063
    %v1256 = vmul.f32 %v1192, %v1064
    %v1257 = vmul.f32 %v1193, %v1065
    %v1258 = vmul.f32 %v1194, %v1066
    %v1259 = vmul.f32 %v1195, %v1067
    %v1260 = vmul.f32 %v1196, %v1068
    %v1261 = vmul.f32 %v1197, %v1069
    %v1262 = vmul.f32 %v1198, %v1070
    %v1263 = vmul.f32 %v1199, %v1071
    %v1264 = vmul.f32 %v1200, %v1072
    %v1265 = vmul.f32 %v1201, %v1073
    %v1266 = vmul.f32 %v1202, %v1074
    %v1267 = vmul.f32 %v1203, %v1075
    %v1268 = vmul.f32 %v1204, %v1076
    %v1269 = vmul.f32 %v1205, %v1077
    %v1270 = vmul.f32 %v1206, %v1078
    %v1271 = vmul.f32 %v1207, %v1079
    %v1272 = vmul.f32 %v1208, %v1080
    %v1273 = vmul.f32 %v1209, %v1081
    %v1274 = vmul.f32 %v1210, %v1082
    %v1275 = vmul.f32 %v1211, %v1083
    %v1276 = vmul.f32 %v1212, %v1084
    %v1277 = vmul.f32 %v1213, %v1085
    %v1278 = vmul.f32 %v1214, %v1086
    %v1279 = vmul.f32 %v1215, %v1087
    %v1280 = vmul.f32 %v1216, %v1088
    %v1281 = vmul.f32 %v1217, %v1089
    %v1282 = vmul.f32 %v1218, %v1090
    %v1283 = vmul.f32 %v1219, %v1091
    %v1284 = vmul.f32 %v1220, %v1092
    %v1285 = vmul.f32 %v1221, %v1093
    %v1286 = vmul.f32 %v1222, %v1094
    %v1287 = vmul.f32 %v1223, %v1095
    %v1288 = vmul.f32 %v1224, %v1096
    %v1289 = vmul.f32 %v1225, %v1097
    %v1290 = vmul.f32 %v1226, %v1098
    %v1291 = vmul.f32 %v1227, %v1099
    %v1292 = vmul.f32 %v1228, %v1100
    %v1293 = vmul.f32 %v1229, %v1101
    %v1294 = vmul.f32 %v1230, %v1102
    %v1295 = vmul.f32 %v1231, %v1103
    %v1296 = vmul.f32 %v1232, %v1104
    %v1297 = vmul.f32 %v1233, %v1105
    %v1298 = vmul.f32 %v1234, %v1106
    %v1299 = vmul.f32 %v1235, %v1107
    %v1300 = vmul.f32 %v1236, %v1108
    %v1301 = vmul.f32 %v1237, %v1109
    %v1302 = vmul.f32 %v1238, %v1110
    %v1303 = vmul.f32 %v1239, %v1111
    %v1304 = vmul.f32 %v1240, %v1112
    %v1305 = vmul.f32 %v1241, %v1113
    %v1306 = vmul.f32 %v1242, %v1114
    %v1307 = vmul.f32 %v1243, %v1115
    %v1308 = vmul.f32 %v1244, %v1116
    %v1309 = vmul.f32 %v1245, %v1117
    %v1310 = vmul.f32 %v1246, %v1118
    %v1311 = vmul.f32 %v1247, %v1119
    %v1312 = vmul.f32 %v1248, %v1120
    %v1313 = vmul.f32 %v1249, %v1057
    %v1314 = vmul.f32 %v1250, %v1058
    %v1315 = vmul.f32 %v1251, %v1059
    %v1316 = vmul.f32 %v1252, %v1060
    %v1317 = vmul.f32 %v1253, %v1061
    %v1318 = vmul.f32 %v1254, %v1062
    %v1319 = vmul.f32 %v1255, %v1063
    %v1320 = vmul.f32 %v1256, %v1064
    %v1321 = vmul.f32 %v1257, %v1065
    %v1322 = vmul.f32 %v1258, %v1066
    %v1323 = vmul.f32 %v1259, %v1067
    %v1324 = vmul.f32 %v1260, %v1068
    %v1325 = vmul.f32 %v1261, %v1069
    %v1326 = vmul.f32 %v1262, %v1070
    %v1327 = vmul.f32 %v1263, %v1071
    %v1328 = vmul.f32 %v1264, %v1072
    %v1329 = vmul.f32 %v1265, %v1073
    %v1330 = vmul.f32 %v1266, %v1074
    %v1331 = vmul.f32 %v1267, %v1075
    %v1332 = vmul.f32 %v1268, %v1076
    %v1333 = vmul.f32 %v1269, %v1077
    %v1334 = vmul.f32 %v1270, %v1078
    %v1335 = vmul.f32 %v1271, %v1079
    %v1336 = vmul.f32 %v1272, %v1080
    %v1337 = vmul.f32 %v1273, %v1081
    %v1338 = vmul.f32 %v1274, %v1082
    %v1339 = vmul.f32 %v1275, %v1083
    %v1340 = vmul.f32 %v1276, %v1084
    %v1341 = vmul.f32 %v1277, %v1085
    %v1342 = vmul.f32 %v1278, %v1086
    %v1343 = vmul.f32 %v1279, %v1087
    %v1344 = vmul.f32 %v1280, %v1088
    %v1345 = vmul.f32 %v1281, %v1089
    %v1346 = vmul.f32 %v1282, %v1090
    %v1347 = vmul.f32 %v1283, %v1091
    %v1348 = vmul.f32 %v1284, %v1092
    %v1349 = vmul.f32 %v1285, %v1093
    %v1350 = vmul.f32 %v1286, %v1094
    %v1351 = vmul.f32 %v1287, %v1095
    %v1352 = vmul.f32 %v1288, %v1096
    %v1353 = vmul.f32 %v1289, %v1097
    %v1354 = vmul.f32 %v1290, %v1098
    %v1355 = vmul.f32 %v1291, %v1099
    %v1356 = vmul.f32 %v1292, %v1100
    %v1357 = vmul.f32 %v1293, %v1101
    %v1358 = vmul.f32 %v1294, %v1102
    %v1359 = vmul.f32 %v1295, %v1103
    %v1360 = vmul.f32 %v1296, %v1104
    %v1361 = vmul.f32 %v1297, %v1105
    %v1362 = vmul.f32 %v1298, %v1106
    %v1363 = vmul.f32 %v1299, %v1107
    %v1364 = vmul.f32 %v1300, %v1108
    %v1365 = vmul.f32 %v1301, %v1109
    %v1366 = vmul.f32 %v1302, %v1110
    %v1367 = vmul.f32 %v1303, %v1111
    %v1368 = vmul.f32 %v1304, %v1112
    %v1369 = vmul.f32 %v1305, %v1113
    %v1370 = vmul.f32 %v1306, %v1114
    %v1371 = vmul.f32 %v1307, %v1115
    %v1372 = vmul.f32 %v1308, %v1116
    %v1373 = vmul.f32 %v1309, %v1117
    %v1374 = vmul.f32 %v1310, %v1118
    %v1375 = vmul.f32 %v1311, %v1119
    %v1376 = vmul.f32 %v1312, %v1120
    %v1377 = vadd.f32 %v1057, %v1313
    %v1378 = vadd.f32 %v1058, %v1314
    %v1379 = vadd.f32 %v1059, %v1315
    %v1380 = vadd.f32 %v1060, %v1316
    %v1381 = vadd.f32 %v1061, %v1317
    %v1382 = vadd.f32 %v1062, %v1318
    %v1383 = vadd.f32 %v1063, %v1319
    %v1384 = vadd.f32 %v1064, %v1320
    %v1385 = vadd.f32 %v1065, %v1321
    %v1386 = vadd.f32 %v1066, %v1322
    %v1387 = vadd.f32 %v1067, %v1323
    %v1388 = vadd.f32 %v1068, %v1324
    %v1389 = vadd.f32 %v1069, %v1325
    %v1390 = vadd.f32 %v1070, %v1326
    %v1391 = vadd.f32 %v1071, %v1327
    %v1392 = vadd.f32 %v1072, %v1328
    %v1393 = vadd.f32 %v1073, %v1329
    %v1394 = vadd.f32 %v1074, %v1330
    %v1395 = vadd.f32 %v1075, %v1331
    %v1396 = vadd.f32 %v1076, %v1332
    %v1397 = vadd.f32 %v1077, %v1333
    %v1398 = vadd.f32 %v1078, %v1334
    %v1399 = vadd.f32 %v1079, %v1335
    %v1400 = vadd.f32 %v1080, %v1336
    %v1401 = vadd.f32 %v1081, %v1337
    %v1402 = vadd.f32 %v1082, %v1338
    %v1403 = vadd.f32 %v1083, %v1339
    %v1404 = vadd.f32 %v1084, %v1340
    %v1405 = vadd.f32 %v1085, %v1341
    %v1406 = vadd.f32 %v1086, %v1342
    %v1407 = vadd.f32 %v1087, %v1343
    %v1408 = vadd.f32 %v1088, %v1344
    %v1409 = vadd.f32 %v1089, %v1345
    %v1410 = vadd.f32 %v1090, %v1346
    %v1411 = vadd.f32 %v1091, %v1347
    %v1412 = vadd.f32 %v1092, %v1348
    %v1413 = vadd.f32 %v1093, %v1349
    %v1414 = vadd.f32 %v1094, %v1350
    %v1415 = vadd.f32 %v1095, %v1351
    %v1416 = vadd.f32 %v1096, %v1352
    %v1417 = vadd.f32 %v1097, %v1353
    %v1418 = vadd.f32 %v1098, %v1354
    %v1419 = vadd.f32 %v1099, %v1355
    %v1420 = vadd.f32 %v1100, %v1356
    %v1421 = vadd.f32 %v1101, %v1357
    %v1422 = vadd.f32 %v1102, %v1358
    %v1423 = vadd.f32 %v1103, %v1359
    %v1424 = vadd.f32 %v1104, %v1360
    %v1425 = vadd.f32 %v1105, %v1361
    %v1426 = vadd.f32 %v1106, %v1362
    %v1427 = vadd.f32 %v1107, %v1363
    %v1428 = vadd.f32 %v1108, %v1364
    %v1429 = vadd.f32 %v1109, %v1365
    %v1430 = vadd.f32 %v1110, %v1366
    %v1431 = vadd.f32 %v1111, %v1367
    %v1432 = vadd.f32 %v1112, %v1368
    %v1433 = vadd.f32 %v1113, %v1369
    %v1434 = vadd.f32 %v1114, %v1370
    %v1435 = vadd.f32 %v1115, %v1371
    %v1436 = vadd.f32 %v1116, %v1372
    %v1437 = vadd.f32 %v1117, %v1373
    %v1438 = vadd.f32 %v1118, %v1374
    %v1439 = vadd.f32 %v1119, %v1375
    %v1440 = vadd.f32 %v1120, %v1376
    %v1441 = vmul.f32 %v1377, 0.7978846
    %v1442 = vmul.f32 %v1378, 0.7978846
    %v1443 = vmul.f32 %v1379, 0.7978846
    %v1444 = vmul.f32 %v1380, 0.7978846
    %v1445 = vmul.f32 %v1381, 0.7978846
    %v1446 = vmul.f32 %v1382, 0.7978846
    %v1447 = vmul.f32 %v1383, 0.7978846
    %v1448 = vmul.f32 %v1384, 0.7978846
    %v1449 = vmul.f32 %v1385, 0.7978846
    %v1450 = vmul.f32 %v1386, 0.7978846
    %v1451 = vmul.f32 %v1387, 0.7978846
    %v1452 = vmul.f32 %v1388, 0.7978846
    %v1453 = vmul.f32 %v1389, 0.7978846
    %v1454 = vmul.f32 %v1390, 0.7978846
    %v1455 = vmul.f32 %v1391, 0.7978846
    %v1456 = vmul.f32 %v1392, 0.7978846
    %v1457 = vmul.f32 %v1393, 0.7978846
    %v1458 = vmul.f32 %v1394, 0.7978846
    %v1459 = vmul.f32 %v1395, 0.7978846
    %v1460 = vmul.f32 %v1396, 0.7978846
    %v1461 = vmul.f32 %v1397, 0.7978846
    %v1462 = vmul.f32 %v1398, 0.7978846
    %v1463 = vmul.f32 %v1399, 0.7978846
    %v1464 = vmul.f32 %v1400, 0.7978846
    %v1465 = vmul.f32 %v1401, 0.7978846
    %v1466 = vmul.f32 %v1402, 0.7978846
    %v1467 = vmul.f32 %v1403, 0.7978846
    %v1468 = vmul.f32 %v1404, 0.7978846
    %v1469 = vmul.f32 %v1405, 0.7978846
    %v1470 = vmul.f32 %v1406, 0.7978846
    %v1471 = vmul.f32 %v1407, 0.7978846
    %v1472 = vmul.f32 %v1408, 0.7978846
    %v1473 = vmul.f32 %v1409, 0.7978846
    %v1474 = vmul.f32 %v1410, 0.7978846
    %v1475 = vmul.f32 %v1411, 0.7978846
    %v1476 = vmul.f32 %v1412, 0.7978846
    %v1477 = vmul.f32 %v1413, 0.7978846
    %v1478 = vmul.f32 %v1414, 0.7978846
    %v1479 = vmul.f32 %v1415, 0.7978846
    %v1480 = vmul.f32 %v1416, 0.7978846
    %v1481 = vmul.f32 %v1417, 0.7978846
    %v1482 = vmul.f32 %v1418, 0.7978846
    %v1483 = vmul.f32 %v1419, 0.7978846
    %v1484 = vmul.f32 %v1420, 0.7978846
    %v1485 = vmul.f32 %v1421, 0.7978846
    %v1486 = vmul.f32 %v1422, 0.7978846
    %v1487 = vmul.f32 %v1423, 0.7978846
    %v1488 = vmul.f32 %v1424, 0.7978846
    %v1489 = vmul.f32 %v1425, 0.7978846
    %v1490 = vmul.f32 %v1426, 0.7978846
    %v1491 = vmul.f32 %v1427, 0.7978846
    %v1492 = vmul.f32 %v1428, 0.7978846
    %v1493 = vmul.f32 %v1429, 0.7978846
    %v1494 = vmul.f32 %v1430, 0.7978846
    %v1495 = vmul.f32 %v1431, 0.7978846
    %v1496 = vmul.f32 %v1432, 0.7978846
    %v1497 = vmul.f32 %v1433, 0.7978846
    %v1498 = vmul.f32 %v1434, 0.7978846
    %v1499 = vmul.f32 %v1435, 0.7978846
    %v1500 = vmul.f32 %v1436, 0.7978846
    %v1501 = vmul.f32 %v1437, 0.7978846
    %v1502 = vmul.f32 %v1438, 0.7978846
    %v1503 = vmul.f32 %v1439, 0.7978846
    %v1504 = vmul.f32 %v1440, 0.7978846
    %v1505 = vtanh.pop %v1441
    %v1506 = vtanh.pop %v1442
    %v1507 = vtanh.pop %v1443
    %v1508 = vtanh.pop %v1444
    %v1509 = vtanh.pop %v1445
    %v1510 = vtanh.pop %v1446
    %v1511 = vtanh.pop %v1447
    %v1512 = vtanh.pop %v1448
    %v1513 = vtanh.pop %v1449
    %v1514 = vtanh.pop %v1450
    %v1515 = vtanh.pop %v1451
    %v1516 = vtanh.pop %v1452
    %v1517 = vtanh.pop %v1453
    %v1518 = vtanh.pop %v1454
    %v1519 = vtanh.pop %v1455
    %v1520 = vtanh.pop %v1456
    %v1521 = vtanh.pop %v1457
    %v1522 = vtanh.pop %v1458
    %v1523 = vtanh.pop %v1459
    %v1524 = vtanh.pop %v1460
    %v1525 = vtanh.pop %v1461
    %v1526 = vtanh.pop %v1462
    %v1527 = vtanh.pop %v1463
    %v1528 = vtanh.pop %v1464
    %v1529 = vtanh.pop %v1465
    %v1530 = vtanh.pop %v1466
    %v1531 = vtanh.pop %v1467
    %v1532 = vtanh.pop %v1468
    %v1533 = vtanh.pop %v1469
    %v1534 = vtanh.pop %v1470
    %v1535 = vtanh.pop %v1471
    %v1536 = vtanh.pop %v1472
    %v1537 = vtanh.pop %v1473
    %v1538 = vtanh.pop %v1474
    %v1539 = vtanh.pop %v1475
    %v1540 = vtanh.pop %v1476
    %v1541 = vtanh.pop %v1477
    %v1542 = vtanh.pop %v1478
    %v1543 = vtanh.pop %v1479
    %v1544 = vtanh.pop %v1480
    %v1545 = vtanh.pop %v1481
    %v1546 = vtanh.pop %v1482
    %v1547 = vtanh.pop %v1483
    %v1548 = vtanh.pop %v1484
    %v1549 = vtanh.pop %v1485
    %v1550 = vtanh.pop %v1486
    %v1551 = vtanh.pop %v1487
    %v1552 = vtanh.pop %v1488
    %v1553 = vtanh.pop %v1489
    %v1554 = vtanh.pop %v1490
    %v1555 = vtanh.pop %v1491
    %v1556 = vtanh.pop %v1492
    %v1557 = vtanh.pop %v1493
    %v1558 = vtanh.pop %v1494
    %v1559 = vtanh.pop %v1495
    %v1560 = vtanh.pop %v1496
    %v1561 = vtanh.pop %v1497
    %v1562 = vtanh.pop %v1498
    %v1563 = vtanh.pop %v1499
    %v1564 = vtanh.pop %v1500
    %v1565 = vtanh.pop %v1501
    %v1566 = vtanh.pop %v1502
    %v1567 = vtanh.pop %v1503
    %v1568 = vtanh.pop %v1504
    %v1569 = vadd.f32 %v1505, 1.0
    %v1570 = vadd.f32 %v1506, 1.0
    %v1571 = vadd.f32 %v1507, 1.0
    %v1572 = vadd.f32 %v1508, 1.0
    %v1573 = vadd.f32 %v1509, 1.0
    %v1574 = vadd.f32 %v1510, 1.0
    %v1575 = vadd.f32 %v1511, 1.0
    %v1576 = vadd.f32 %v1512, 1.0
    %v1577 = vadd.f32 %v1513, 1.0
    %v1578 = vadd.f32 %v1514, 1.0
    %v1579 = vadd.f32 %v1515, 1.0
    %v1580 = vadd.f32 %v1516, 1.0
    %v1581 = vadd.f32 %v1517, 1.0
    %v1582 = vadd.f32 %v1518, 1.0
    %v1583 = vadd.f32 %v1519, 1.0
    %v1584 = vadd.f32 %v1520, 1.0
    %v1585 = vadd.f32 %v1521, 1.0
    %v1586 = vadd.f32 %v1522, 1.0
    %v1587 = vadd.f32 %v1523, 1.0
    %v1588 = vadd.f32 %v1524, 1.0
    %v1589 = vadd.f32 %v1525, 1.0
    %v1590 = vadd.f32 %v1526, 1.0
    %v1591 = vadd.f32 %v1527, 1.0
    %v1592 = vadd.f32 %v1528, 1.0
    %v1593 = vadd.f32 %v1529, 1.0
    %v1594 = vadd.f32 %v1530, 1.0
    %v1595 = vadd.f32 %v1531, 1.0
    %v1596 = vadd.f32 %v1532, 1.0
    %v1597 = vadd.f32 %v1533, 1.0
    %v1598 = vadd.f32 %v1534, 1.0
    %v1599 = vadd.f32 %v1535, 1.0
    %v1600 = vadd.f32 %v1536, 1.0
    %v1601 = vadd.f32 %v1537, 1.0
    %v1602 = vadd.f32 %v1538, 1.0
    %v1603 = vadd.f32 %v1539, 1.0
    %v1604 = vadd.f32 %v1540, 1.0
    %v1605 = vadd.f32 %v1541, 1.0
    %v1606 = vadd.f32 %v1542, 1.0
    %v1607 = vadd.f32 %v1543, 1.0
    %v1608 = vadd.f32 %v1544, 1.0
    %v1609 = vadd.f32 %v1545, 1.0
    %v1610 = vadd.f32 %v1546, 1.0
    %v1611 = vadd.f32 %v1547, 1.0
    %v1612 = vadd.f32 %v1548, 1.0
    %v1613 = vadd.f32 %v1549, 1.0
    %v1614 = vadd.f32 %v1550, 1.0
    %v1615 = vadd.f32 %v1551, 1.0
    %v1616 = vadd.f32 %v1552, 1.0
    %v1617 = vadd.f32 %v1553, 1.0
    %v1618 = vadd.f32 %v1554, 1.0
    %v1619 = vadd.f32 %v1555, 1.0
    %v1620 = vadd.f32 %v1556, 1.0
    %v1621 = vadd.f32 %v1557, 1.0
    %v1622 = vadd.f32 %v1558, 1.0
    %v1623 = vadd.f32 %v1559, 1.0
    %v1624 = vadd.f32 %v1560, 1.0
    %v1625 = vadd.f32 %v1561, 1.0
    %v1626 = vadd.f32 %v1562, 1.0
    %v1627 = vadd.f32 %v1563, 1.0
    %v1628 = vadd.f32 %v1564, 1.0
    %v1629 = vadd.f32 %v1565, 1.0
    %v1630 = vadd.f32 %v1566, 1.0
    %v1631 = vadd.f32 %v1567, 1.0
    %v1632 = vadd.f32 %v1568, 1.0
    %v1633 = vmul.f32 %v1121, %v1569
    %v1634 = vmul.f32 %v1122, %v1570
    %v1635 = vmul.f32 %v1123, %v1571
    %v1636 = vmul.f32 %v1124, %v1572
    %v1637 = vmul.f32 %v1125, %v1573
    %v1638 = vmul.f32 %v1126, %v1574
    %v1639 = vmul.f32 %v1127, %v1575
    %v1640 = vmul.f32 %v1128, %v1576
    %v1641 = vmul.f32 %v1129, %v1577
    %v1642 = vmul.f32 %v1130, %v1578
    %v1643 = vmul.f32 %v1131, %v1579
    %v1644 = vmul.f32 %v1132, %v1580
    %v1645 = vmul.f32 %v1133, %v1581
    %v1646 = vmul.f32 %v1134, %v1582
    %v1647 = vmul.f32 %v1135, %v1583
    %v1648 = vmul.f32 %v1136, %v1584
    %v1649 = vmul.f32 %v1137, %v1585
    %v1650 = vmul.f32 %v1138, %v1586
    %v1651 = vmul.f32 %v1139, %v1587
    %v1652 = vmul.f32 %v1140, %v1588
    %v1653 = vmul.f32 %v1141, %v1589
    %v1654 = vmul.f32 %v1142, %v1590
    %v1655 = vmul.f32 %v1143, %v1591
    %v1656 = vmul.f32 %v1144, %v1592
    %v1657 = vmul.f32 %v1145, %v1593
    %v1658 = vmul.f32 %v1146, %v1594
    %v1659 = vmul.f32 %v1147, %v1595
    %v1660 = vmul.f32 %v1148, %v1596
    %v1661 = vmul.f32 %v1149, %v1597
    %v1662 = vmul.f32 %v1150, %v1598
    %v1663 = vmul.f32 %v1151, %v1599
    %v1664 = vmul.f32 %v1152, %v1600
    %v1665 = vmul.f32 %v1153, %v1601
    %v1666 = vmul.f32 %v1154, %v1602
    %v1667 = vmul.f32 %v1155, %v1603
    %v1668 = vmul.f32 %v1156, %v1604
    %v1669 = vmul.f32 %v1157, %v1605
    %v1670 = vmul.f32 %v1158, %v1606
    %v1671 = vmul.f32 %v1159, %v1607
    %v1672 = vmul.f32 %v1160, %v1608
    %v1673 = vmul.f32 %v1161, %v1609
    %v1674 = vmul.f32 %v1162, %v1610
    %v1675 = vmul.f32 %v1163, %v1611
    %v1676 = vmul.f32 %v1164, %v1612
    %v1677 = vmul.f32 %v1165, %v1613
    %v1678 = vmul.f32 %v1166, %v1614
    %v1679 = vmul.f32 %v1167, %v1615
    %v1680 = vmul.f32 %v1168, %v1616
    %v1681 = vmul.f32 %v1169, %v1617
    %v1682 = vmul.f32 %v1170, %v1618
    %v1683 = vmul.f32 %v1171, %v1619
    %v1684 = vmul.f32 %v1172, %v1620
    %v1685 = vmul.f32 %v1173, %v1621
    %v1686 = vmul.f32 %v1174, %v1622
    %v1687 = vmul.f32 %v1175, %v1623
    %v1688 = vmul.f32 %v1176, %v1624
    %v1689 = vmul.f32 %v1177, %v1625
    %v1690 = vmul.f32 %v1178, %v1626
    %v1691 = vmul.f32 %v1179, %v1627
    %v1692 = vmul.f32 %v1180, %v1628
    %v1693 = vmul.f32 %v1181, %v1629
    %v1694 = vmul.f32 %v1182, %v1630
    %v1695 = vmul.f32 %v1183, %v1631
    %v1696 = vmul.f32 %v1184, %v1632
    %v1697 = vpack.c.bf16 %v1634, %v1633
    %v1698 = vpack.c.bf16 %v1636, %v1635
    %v1699 = vpack.c.bf16 %v1638, %v1637
    %v1700 = vpack.c.bf16 %v1640, %v1639
    %v1701 = vpack.c.bf16 %v1642, %v1641
    %v1702 = vpack.c.bf16 %v1644, %v1643
    %v1703 = vpack.c.bf16 %v1646, %v1645
    %v1704 = vpack.c.bf16 %v1648, %v1647
    %v1705 = vpack.c.bf16 %v1650, %v1649
    %v1706 = vpack.c.bf16 %v1652, %v1651
    %v1707 = vpack.c.bf16 %v1654, %v1653
    %v1708 = vpack.c.bf16 %v1656, %v1655
    %v1709 = vpack.c.bf16 %v1658, %v1657
    %v1710 = vpack.c.bf16 %v1660, %v1659
    %v1711 = vpack.c.bf16 %v1662, %v1661
    %v1712 = vpack.c.bf16 %v1664, %v1663
    %v1713 = vpack.c.bf16 %v1666, %v1665
    %v1714 = vpack.c.bf16 %v1668, %v1667
    %v1715 = vpack.c.bf16 %v1670, %v1669
    %v1716 = vpack.c.bf16 %v1672, %v1671
    %v1717 = vpack.c.bf16 %v1674, %v1673
    %v1718 = vpack.c.bf16 %v1676, %v1675
    %v1719 = vpack.c.bf16 %v1678, %v1677
    %v1720 = vpack.c.bf16 %v1680, %v1679
    %v1721 = vpack.c.bf16 %v1682, %v1681
    %v1722 = vpack.c.bf16 %v1684, %v1683
    %v1723 = vpack.c.bf16 %v1686, %v1685
    %v1724 = vpack.c.bf16 %v1688, %v1687
    %v1725 = vpack.c.bf16 %v1690, %v1689
    %v1726 = vpack.c.bf16 %v1692, %v1691
    %v1727 = vpack.c.bf16 %v1694, %v1693
    %v1728 = vpack.c.bf16 %v1696, %v1695
    %v1761 = vunpack.c.l.b16 %v1697
    %v1762 = vunpack.c.h.b16 %v1697
    %v1763 = vunpack.c.l.b16 %v1698
    %v1764 = vunpack.c.h.b16 %v1698
    %v1765 = vunpack.c.l.b16 %v1699
    %v1766 = vunpack.c.h.b16 %v1699
    %v1767 = vunpack.c.l.b16 %v1700
    %v1768 = vunpack.c.h.b16 %v1700
    %v1769 = vunpack.c.l.b16 %v1701
    %v1770 = vunpack.c.h.b16 %v1701
    %v1771 = vunpack.c.l.b16 %v1702
    %v1772 = vunpack.c.h.b16 %v1702
    %v1773 = vunpack.c.l.b16 %v1703
    %v1774 = vunpack.c.h.b16 %v1703
    %v1775 = vunpack.c.l.b16 %v1704
    %v1776 = vunpack.c.h.b16 %v1704
    %v1777 = vunpack.c.l.b16 %v1705
    %v1778 = vunpack.c.h.b16 %v1705
    %v1779 = vunpack.c.l.b16 %v1706
    %v1780 = vunpack.c.h.b16 %v1706
    %v1781 = vunpack.c.l.b16 %v1707
    %v1782 = vunpack.c.h.b16 %v1707
    %v1783 = vunpack.c.l.b16 %v1708
    %v1784 = vunpack.c.h.b16 %v1708
    %v1785 = vunpack.c.l.b16 %v1709
    %v1786 = vunpack.c.h.b16 %v1709
    %v1787 = vunpack.c.l.b16 %v1710
    %v1788 = vunpack.c.h.b16 %v1710
    %v1789 = vunpack.c.l.b16 %v1711
    %v1790 = vunpack.c.h.b16 %v1711
    %v1791 = vunpack.c.l.b16 %v1712
    %v1792 = vunpack.c.h.b16 %v1712
    %v1793 = vunpack.c.l.b16 %v1713
    %v1794 = vunpack.c.h.b16 %v1713
    %v1795 = vunpack.c.l.b16 %v1714
    %v1796 = vunpack.c.h.b16 %v1714
    %v1797 = vunpack.c.l.b16 %v1715
    %v1798 = vunpack.c.h.b16 %v1715
    %v1799 = vunpack.c.l.b16 %v1716
    %v1800 = vunpack.c.h.b16 %v1716
    %v1801 = vunpack.c.l.b16 %v1717
    %v1802 = vunpack.c.h.b16 %v1717
    %v1803 = vunpack.c.l.b16 %v1718
    %v1804 = vunpack.c.h.b16 %v1718
    %v1805 = vunpack.c.l.b16 %v1719
    %v1806 = vunpack.c.h.b16 %v1719
    %v1807 = vunpack.c.l.b16 %v1720
    %v1808 = vunpack.c.h.b16 %v1720
    %v1809 = vunpack.c.l.b16 %v1721
    %v1810 = vunpack.c.h.b16 %v1721
    %v1811 = vunpack.c.l.b16 %v1722
    %v1812 = vunpack.c.h.b16 %v1722
    %v1813 = vunpack.c.l.b16 %v1723
    %v1814 = vunpack.c.h.b16 %v1723
    %v1815 = vunpack.c.l.b16 %v1724
    %v1816 = vunpack.c.h.b16 %v1724
    %v1817 = vunpack.c.l.b16 %v1725
    %v1818 = vunpack.c.h.b16 %v1725
    %v1819 = vunpack.c.l.b16 %v1726
    %v1820 = vunpack.c.h.b16 %v1726
    %v1821 = vunpack.c.l.b16 %v1727
    %v1822 = vunpack.c.h.b16 %v1727
    %v1823 = vunpack.c.l.b16 %v1728
    %v1824 = vunpack.c.h.b16 %v1728
    %v1825 = vpack.c.b16 %v1761, %v1761
    %v1826 = vpack.c.b16 %v1762, %v1762
    %v1827 = vpack.c.b16 %v1763, %v1763
    %v1828 = vpack.c.b16 %v1764, %v1764
    %v1829 = vpack.c.b16 %v1765, %v1765
    %v1830 = vpack.c.b16 %v1766, %v1766
    %v1831 = vpack.c.b16 %v1767, %v1767
    %v1832 = vpack.c.b16 %v1768, %v1768
    %v1833 = vpack.c.b16 %v1769, %v1769
    %v1834 = vpack.c.b16 %v1770, %v1770
    %v1835 = vpack.c.b16 %v1771, %v1771
    %v1836 = vpack.c.b16 %v1772, %v1772
    %v1837 = vpack.c.b16 %v1773, %v1773
    %v1838 = vpack.c.b16 %v1774, %v1774
    %v1839 = vpack.c.b16 %v1775, %v1775
    %v1840 = vpack.c.b16 %v1776, %v1776
    %v1841 = vpack.c.b16 %v1777, %v1777
    %v1842 = vpack.c.b16 %v1778, %v1778
    %v1843 = vpack.c.b16 %v1779, %v1779
    %v1844 = vpack.c.b16 %v1780, %v1780
    %v1845 = vpack.c.b16 %v1781, %v1781
    %v1846 = vpack.c.b16 %v1782, %v1782
    %v1847 = vpack.c.b16 %v1783, %v1783
    %v1848 = vpack.c.b16 %v1784, %v1784
    %v1849 = vpack.c.b16 %v1785, %v1785
    %v1850 = vpack.c.b16 %v1786, %v1786
    %v1851 = vpack.c.b16 %v1787, %v1787
    %v1852 = vpack.c.b16 %v1788, %v1788
    %v1853 = vpack.c.b16 %v1789, %v1789
    %v1854 = vpack.c.b16 %v1790, %v1790
    %v1855 = vpack.c.b16 %v1791, %v1791
    %v1856 = vpack.c.b16 %v1792, %v1792
    %v1857 = vpack.c.b16 %v1793, %v1793
    %v1858 = vpack.c.b16 %v1794, %v1794
    %v1859 = vpack.c.b16 %v1795, %v1795
    %v1860 = vpack.c.b16 %v1796, %v1796
    %v1861 = vpack.c.b16 %v1797, %v1797
    %v1862 = vpack.c.b16 %v1798, %v1798
    %v1863 = vpack.c.b16 %v1799, %v1799
    %v1864 = vpack.c.b16 %v1800, %v1800
    %v1865 = vpack.c.b16 %v1801, %v1801
    %v1866 = vpack.c.b16 %v1802, %v1802
    %v1867 = vpack.c.b16 %v1803, %v1803
    %v1868 = vpack.c.b16 %v1804, %v1804
    %v1869 = vpack.c.b16 %v1805, %v1805
    %v1870 = vpack.c.b16 %v1806, %v1806
    %v1871 = vpack.c.b16 %v1807, %v1807
    %v1872 = vpack.c.b16 %v1808, %v1808
    %v1873 = vpack.c.b16 %v1809, %v1809
    %v1874 = vpack.c.b16 %v1810, %v1810
    %v1875 = vpack.c.b16 %v1811, %v1811
    %v1876 = vpack.c.b16 %v1812, %v1812
    %v1877 = vpack.c.b16 %v1813, %v1813
    %v1878 = vpack.c.b16 %v1814, %v1814
    %v1879 = vpack.c.b16 %v1815, %v1815
    %v1880 = vpack.c.b16 %v1816, %v1816
    %v1881 = vpack.c.b16 %v1817, %v1817
    %v1882 = vpack.c.b16 %v1818, %v1818
    %v1883 = vpack.c.b16 %v1819, %v1819
    %v1884 = vpack.c.b16 %v1820, %v1820
    %v1885 = vpack.c.b16 %v1821, %v1821
    %v1886 = vpack.c.b16 %v1822, %v1822
    %v1887 = vpack.c.b16 %v1823, %v1823
    %v1888 = vpack.c.b16 %v1824, %v1824
    %vm1953 = vcmask 519168
    %1954 = vst.msk [vmem:[%s4] sm:$0xf] %vm1953, %v1825
    %1955 = vst.msk [vmem:[%s4 + $0x4] sm:$0xf] %vm1953, %v1826
    %1956 = vst.msk [vmem:[%s4 + $0x8] sm:$0xf] %vm1953, %v1827
    %1957 = vst.msk [vmem:[%s4 + $0xc] sm:$0xf] %vm1953, %v1828
    %1958 = vst.msk [vmem:[%s4 + $0x10] sm:$0xf] %vm1953, %v1829
    %1959 = vst.msk [vmem:[%s4 + $0x14] sm:$0xf] %vm1953, %v1830
    %1960 = vst.msk [vmem:[%s4 + $0x18] sm:$0xf] %vm1953, %v1831
    %1961 = vst.msk [vmem:[%s4 + $0x1c] sm:$0xf] %vm1953, %v1832
    %1962 = vst.msk [vmem:[%s4 + $0x20] sm:$0xf] %vm1953, %v1833
    %1963 = vst.msk [vmem:[%s4 + $0x24] sm:$0xf] %vm1953, %v1834
    %1964 = vst.msk [vmem:[%s4 + $0x28] sm:$0xf] %vm1953, %v1835
    %1965 = vst.msk [vmem:[%s4 + $0x2c] sm:$0xf] %vm1953, %v1836
    %1966 = vst.msk [vmem:[%s4 + $0x30] sm:$0xf] %vm1953, %v1837
    %1967 = vst.msk [vmem:[%s4 + $0x34] sm:$0xf] %vm1953, %v1838
    %1968 = vst.msk [vmem:[%s4 + $0x38] sm:$0xf] %vm1953, %v1839
    %1969 = vst.msk [vmem:[%s4 + $0x3c] sm:$0xf] %vm1953, %v1840
    %1970 = vst.msk [vmem:[%s4 + $0x40] sm:$0xf] %vm1953, %v1841
    %1971 = vst.msk [vmem:[%s4 + $0x44] sm:$0xf] %vm1953, %v1842
    %1972 = vst.msk [vmem:[%s4 + $0x48] sm:$0xf] %vm1953, %v1843
    %1973 = vst.msk [vmem:[%s4 + $0x4c] sm:$0xf] %vm1953, %v1844
    %1974 = vst.msk [vmem:[%s4 + $0x50] sm:$0xf] %vm1953, %v1845
    %1975 = vst.msk [vmem:[%s4 + $0x54] sm:$0xf] %vm1953, %v1846
    %1976 = vst.msk [vmem:[%s4 + $0x58] sm:$0xf] %vm1953, %v1847
    %1977 = vst.msk [vmem:[%s4 + $0x5c] sm:$0xf] %vm1953, %v1848
    %1978 = vst.msk [vmem:[%s4 + $0x60] sm:$0xf] %vm1953, %v1849
    %1979 = vst.msk [vmem:[%s4 + $0x64] sm:$0xf] %vm1953, %v1850
    %1980 = vst.msk [vmem:[%s4 + $0x68] sm:$0xf] %vm1953, %v1851
    %1981 = vst.msk [vmem:[%s4 + $0x6c] sm:$0xf] %vm1953, %v1852
    %1982 = vst.msk [vmem:[%s4 + $0x70] sm:$0xf] %vm1953, %v1853
    %1983 = vst.msk [vmem:[%s4 + $0x74] sm:$0xf] %vm1953, %v1854
    %1984 = vst.msk [vmem:[%s4 + $0x78] sm:$0xf] %vm1953, %v1855
    %1985 = vst.msk [vmem:[%s4 + $0x7c] sm:$0xf] %vm1953, %v1856
    %1986 = vst.msk [vmem:[%s4 + $0x80] sm:$0xf] %vm1953, %v1857
    %1987 = vst.msk [vmem:[%s4 + $0x84] sm:$0xf] %vm1953, %v1858
    %1988 = vst.msk [vmem:[%s4 + $0x88] sm:$0xf] %vm1953, %v1859
    %1989 = vst.msk [vmem:[%s4 + $0x8c] sm:$0xf] %vm1953, %v1860
    %1990 = vst.msk [vmem:[%s4 + $0x90] sm:$0xf] %vm1953, %v1861
    %1991 = vst.msk [vmem:[%s4 + $0x94] sm:$0xf] %vm1953, %v1862
    %1992 = vst.msk [vmem:[%s4 + $0x98] sm:$0xf] %vm1953, %v1863
    %1993 = vst.msk [vmem:[%s4 + $0x9c] sm:$0xf] %vm1953, %v1864
    %1994 = vst.msk [vmem:[%s4 + $0xa0] sm:$0xf] %vm1953, %v1865
    %1995 = vst.msk [vmem:[%s4 + $0xa4] sm:$0xf] %vm1953, %v1866
    %1996 = vst.msk [vmem:[%s4 + $0xa8] sm:$0xf] %vm1953, %v1867
    %1997 = vst.msk [vmem:[%s4 + $0xac] sm:$0xf] %vm1953, %v1868
    %1998 = vst.msk [vmem:[%s4 + $0xb0] sm:$0xf] %vm1953, %v1869
    %1999 = vst.msk [vmem:[%s4 + $0xb4] sm:$0xf] %vm1953, %v1870
    %2000 = vst.msk [vmem:[%s4 + $0xb8] sm:$0xf] %vm1953, %v1871
    %2001 = vst.msk [vmem:[%s4 + $0xbc] sm:$0xf] %vm1953, %v1872
    %2002 = vst.msk [vmem:[%s4 + $0xc0] sm:$0xf] %vm1953, %v1873
    %2003 = vst.msk [vmem:[%s4 + $0xc4] sm:$0xf] %vm1953, %v1874
    %2004 = vst.msk [vmem:[%s4 + $0xc8] sm:$0xf] %vm1953, %v1875
    %2005 = vst.msk [vmem:[%s4 + $0xcc] sm:$0xf] %vm1953, %v1876
    %2006 = vst.msk [vmem:[%s4 + $0xd0] sm:$0xf] %vm1953, %v1877
    %2007 = vst.msk [vmem:[%s4 + $0xd4] sm:$0xf] %vm1953, %v1878
    %2008 = vst.msk [vmem:[%s4 + $0xd8] sm:$0xf] %vm1953, %v1879
    %2009 = vst.msk [vmem:[%s4 + $0xdc] sm:$0xf] %vm1953, %v1880
    %2010 = vst.msk [vmem:[%s4 + $0xe0] sm:$0xf] %vm1953, %v1881
    %2011 = vst.msk [vmem:[%s4 + $0xe4] sm:$0xf] %vm1953, %v1882
    %2012 = vst.msk [vmem:[%s4 + $0xe8] sm:$0xf] %vm1953, %v1883
    %2013 = vst.msk [vmem:[%s4 + $0xec] sm:$0xf] %vm1953, %v1884
    %2014 = vst.msk [vmem:[%s4 + $0xf0] sm:$0xf] %vm1953, %v1885
    %2015 = vst.msk [vmem:[%s4 + $0xf4] sm:$0xf] %vm1953, %v1886
    %2016 = vst.msk [vmem:[%s4 + $0xf8] sm:$0xf] %vm1953, %v1887
    %2017 = vst.msk [vmem:[%s4 + $0xfc] sm:$0xf] %vm1953, %v1888
  $region25: #{tpu_custom_call.1} parent=0 // pred_fallthru
    _
  // Predicated region
  $region26: #{tpu_custom_call.1} parent=0 // pred_check
    _
  $region27: #{tpu_custom_call.1} parent=0 // pred_check_branch
    %2019 = sbr.rel (0) target = $region29
  $region28: #{tpu_custom_call.1} parent=0 // pred_region
    _
  $region29: #{tpu_custom_call.1} parent=0 // pred_fallthru
    _
  // Predicated region
  $region30: #{tpu_custom_call.1} parent=0 // pred_check
    _
  $region31: #{tpu_custom_call.1} parent=0 // pred_check_branch
    %2021 = sbr.rel (0) target = $region33
  $region32: #{tpu_custom_call.1} parent=0 // pred_region
    _
  $region33: #{tpu_custom_call.1} parent=0 // pred_fallthru
    _

</llo_original>
